<compile_context>
chip_gen: v7x
topology: tpu7x:2x2x1
jax: 0.10.0
libtpu: 0.0.40
codegen_flags: <defaults>
</compile_context>

<pallas_src>
import jax
import jax.numpy as jnp
from jax.experimental import pallas as pl
from jax.experimental.pallas import tpu as pltpu

NEG_SLOPE = 0.01  # nn.LeakyReLU default


def _leaky_relu(x):
    return jnp.where(x >= 0, x, NEG_SLOPE * x)


def _full_spec(shape):
    # whole-array block, single grid point
    return pl.BlockSpec(shape, lambda i: (0,) * len(shape))


# -----------------------------------------------------------------------------
# Fused forward kernel: everything lives in VMEM for the whole pass.
# -----------------------------------------------------------------------------
def _fused_forward_kernel(
        x_ref, ef_ref, e0_ref, e1_ref, ns_ref, es_ref,
        in_w1, in_b1, in_w2, in_b2,
        ein_w1, ein_b1, ein_w2, ein_b2,
        att_w1, att_b1, att_w2, att_b2,
        g1_w1, g1_b1, g1_w2, g1_b2,
        g2_w1, g2_b1, g2_w2, g2_b2,
        en_w1, en_b1, en_w2t, en_b2t,
        o_ref):
    f32 = jnp.float32
    bf16 = jnp.bfloat16

    def mm(a, b):
        # MXU matmul: bf16 operands, f32 accumulation.
        return jnp.dot(a.astype(bf16), b.astype(bf16), preferred_element_type=f32)

    # --- preprocessing (scalers) fused into the kernel prologue --------------
    ef = ef_ref[...]
    # edge_features /= (edge_features + 1e-4) / edge_scaler  (EUP reciprocal)
    ef = ef * es_ref[...] * pl.reciprocal(ef + 1e-4, approx=True)
    x = x_ref[...] / ns_ref[...]               # X /= node_scaler

    n_nodes = x.shape[0]
    n_edges = ef.shape[0]

    # --- (E, N) gather one-hots, built ONCE in bf16 (exact 0/1 values) -------
    iota_en = jax.lax.broadcasted_iota(jnp.int32, (n_edges, n_nodes), 1)
    oh_e0 = (e0_ref[...] == iota_en).astype(bf16)     # gather rows e0
    oh_e1 = (e1_ref[...] == iota_en).astype(bf16)     # gather rows e1

    # --- edge input network ---------------------------------------------------
    h = _leaky_relu(mm(ef, ein_w1[...]) + ein_b1[...])
    efnn = _leaky_relu(mm(h, ein_w2[...]) + ein_b2[...])          # (E, EH)

    # --- attention heads, packed (block-diagonal second layer) ---------------
    ah = _leaky_relu(mm(efnn, att_w1[...]) + att_b1[...])         # (E, 2*EH)
    alpha = jax.nn.sigmoid(mm(ah, att_w2[...]) + att_b2[...])     # (E, 2)
    alpha_dir = alpha[:, 0:1]
    alpha_rev = alpha[:, 1:2]

    # --- node input network ---------------------------------------------------
    h = _leaky_relu(mm(x, in_w1[...]) + in_b1[...])
    node_emb = _leaky_relu(mm(h, in_w2[...]) + in_b2[...])        # (N, H)

    zeros_nh = jnp.zeros_like(node_emb)
    # contract over the edge axis of the SAME (E, N) gather one-hots ->
    # scatter-add onto nodes, no transposed one-hot copies needed.
    scatter_dn = (((0,), (0,)), ((), ()))

    # --- EdgeConv blocks (graphconvs[:2]) -------------------------------------
    for (w1, b1, w2, b2) in ((g1_w1, g1_b1, g1_w2, g1_b2),
                             (g2_w1, g2_b1, g2_w2, g2_b2)):
        emb_bf = node_emb.astype(bf16)
        g0 = jnp.dot(oh_e0, emb_bf, preferred_element_type=f32)   # node_emb[e0]
        g1 = jnp.dot(oh_e1, emb_bf, preferred_element_type=f32)   # node_emb[e1]

        # Batch self / direct / reverse messages into ONE lane-packed MXU pass:
        # rows [0:N] self-loop (delta = 0), [N:N+E] direct, [N+E:] reverse.
        x_dst = jnp.concatenate([node_emb, g0, g1], axis=0)       # (N+2E, H)
        delta = jnp.concatenate([zeros_nh, g1 - g0, g0 - g1], axis=0)
        packed = jnp.concatenate([x_dst, delta], axis=1)          # (N+2E, 2H)
        m = _leaky_relu(mm(packed, w1[...]) + b1[...])
        m = _leaky_relu(mm(m, w2[...]) + b2[...])                 # (N+2E, H)

        m_self = m[:n_nodes]
        m_dir = alpha_dir * m[n_nodes:n_nodes + n_edges]
        m_rev = alpha_rev * m[n_nodes + n_edges:]

        node_emb = (m_self
                    + jax.lax.dot_general(oh_e0, m_dir.astype(bf16),
                                          dimension_numbers=scatter_dn,
                                          preferred_element_type=f32)
                    + jax.lax.dot_general(oh_e1, m_rev.astype(bf16),
                                          dimension_numbers=scatter_dn,
                                          preferred_element_type=f32))

    # --- final edge network: lane-packed (E, 2H+EH+EF) activation -------------
    emb_bf = node_emb.astype(bf16)
    g0 = jnp.dot(oh_e0, emb_bf, preferred_element_type=f32)
    g1 = jnp.dot(oh_e1, emb_bf, preferred_element_type=f32)
    edge_emb = jnp.concatenate([g0, g1, efnn, ef], axis=1)        # (E, 60)
    h = _leaky_relu(mm(edge_emb, en_w1[...]) + en_b1[...])        # (E, H)

    # classifier computed transposed -> lane-dense (out_dim, E) output slab
    logits_t = jax.lax.dot_general(en_w2t[...].astype(bf16), h.astype(bf16),
                                   dimension_numbers=(((1,), (1,)), ((), ())),
                                   preferred_element_type=f32)    # (out_dim, E)
    o_ref[...] = jax.nn.sigmoid(logits_t + en_b2t[...])


# -----------------------------------------------------------------------------
# Wrapper: one pallas_call for the whole forward pass.
# -----------------------------------------------------------------------------
def gnn_track_linking_forward(params, X, edge_features, edge_index):
    assert len(params["graphconvs"]) >= 2   # reference forward uses graphconvs[:2]
    n_nodes = X.shape[0]
    n_edges = edge_features.shape[0]
    en_w1, en_b1, en_w2, en_b2 = params["edgenet"]
    out_dim = en_w2.shape[1]

    e0 = edge_index[:, 0].astype(jnp.int32)[:, None]
    e1 = edge_index[:, 1].astype(jnp.int32)[:, None]

    inputs = [
        X.astype(jnp.float32), edge_features.astype(jnp.float32), e0, e1,
        params["node_scaler"], params["edge_scaler"],
        *params["input"], *params["edge_input"], *params["attention"],
        *params["graphconvs"][0], *params["graphconvs"][1],
        en_w1, en_b1, en_w2.T, en_b2.T,     # classifier transposed (lane-dense out)
    ]

    # scoped-VMEM limit sized from the actual resident footprint
    resident = sum(int(a.size) * a.dtype.itemsize for a in inputs)
    resident += 2 * n_edges * n_nodes * 2                        # bf16 one-hots
    resident += 8 * (n_nodes + 2 * n_edges) * 64 * 4             # activation slabs
    vmem_limit = int(min(64 * 2 ** 20, max(32 * 2 ** 20, 4 * resident)))

    pred_t = pl.pallas_call(
        _fused_forward_kernel,
        out_shape=jax.ShapeDtypeStruct((out_dim, n_edges), jnp.float32),
        grid=(1,),
        in_specs=[_full_spec(a.shape) for a in inputs],
        out_specs=_full_spec((out_dim, n_edges)),
        compiler_params=pltpu.CompilerParams(
            dimension_semantics=("arbitrary",),
            vmem_limit_bytes=vmem_limit),
    )(*inputs)
    return pred_t.T   # (E, out_dim), matching the PyTorch module


# -----------------------------------------------------------------------------
# Parameter construction (deterministic, PyTorch-default-style uniform init).
# -----------------------------------------------------------------------------
def _linear_init(key, fan_in, fan_out):
    k_w, k_b = jax.random.split(key)
    bound = 1.0 / (fan_in ** 0.5)
    w = jax.random.uniform(k_w, (fan_in, fan_out), jnp.float32, -bound, bound)
    b = jax.random.uniform(k_b, (1, fan_out), jnp.float32, -bound, bound)
    return w, b


def init_params(key, input_dim=19, hidden_dim=16, output_dim=1, niters=2,
                edge_feature_dim=12, edge_hidden_dim=16):
    keys = jax.random.split(key, 10 + 2 * niters)
    p = {}
    p["node_scaler"] = jnp.ones((1, input_dim), jnp.float32)
    p["edge_scaler"] = jnp.ones((1, edge_feature_dim), jnp.float32)

    p["input"] = (*_linear_init(keys[0], input_dim, hidden_dim),
                  *_linear_init(keys[1], hidden_dim, hidden_dim))
    p["edge_input"] = (*_linear_init(keys[2], edge_feature_dim, edge_hidden_dim),
                       *_linear_init(keys[3], edge_hidden_dim, edge_hidden_dim))

    # attention_direct / attention_reverse packed into one two-layer MLP with a
    # block-diagonal second layer (exactly equivalent, lane-denser (E,2) output).
    wd1, bd1 = _linear_init(keys[4], edge_hidden_dim, edge_hidden_dim)
    wd2, bd2 = _linear_init(keys[5], edge_hidden_dim, 1)
    wr1, br1 = _linear_init(keys[6], edge_hidden_dim, edge_hidden_dim)
    wr2, br2 = _linear_init(keys[7], edge_hidden_dim, 1)
    att_w1 = jnp.concatenate([wd1, wr1], axis=1)                 # (EH, 2*EH)
    att_b1 = jnp.concatenate([bd1, br1], axis=1)                 # (1, 2*EH)
    att_w2 = jnp.zeros((2 * edge_hidden_dim, 2), jnp.float32)
    att_w2 = att_w2.at[:edge_hidden_dim, 0:1].set(wd2)
    att_w2 = att_w2.at[edge_hidden_dim:, 1:2].set(wr2)           # block-diagonal
    att_b2 = jnp.concatenate([bd2, br2], axis=1)                 # (1, 2)
    p["attention"] = (att_w1, att_b1, att_w2, att_b2)

    gcs = []
    for i in range(niters):
        w1, b1 = _linear_init(keys[8 + 2 * i], 2 * hidden_dim, 2 * hidden_dim)
        w2, b2 = _linear_init(keys[9 + 2 * i], 2 * hidden_dim, hidden_dim)
        gcs.append((w1, b1, w2, b2))   # full (2H,2H)/(2H,H); kernel lane-packs input
    p["graphconvs"] = gcs

    concat_dim = 2 * hidden_dim + edge_hidden_dim + edge_feature_dim  # 60
    w1, b1 = _linear_init(keys[8 + 2 * niters], concat_dim, hidden_dim)
    w2, b2 = _linear_init(keys[9 + 2 * niters], hidden_dim, output_dim)
    p["edgenet"] = (w1, b1, w2, b2)
    return p


if __name__ == "__main__":
    key = jax.random.PRNGKey(0)
    k_p, k_x, k_ef, k_e0, k_e1 = jax.random.split(key, 5)

    N_NODES, N_EDGES = 12, 20
    INPUT_DIM, EDGE_FEATURE_DIM = 19, 12

    params = init_params(k_p, input_dim=INPUT_DIM, hidden_dim=16, output_dim=1,
                         niters=2, edge_feature_dim=EDGE_FEATURE_DIM,
                         edge_hidden_dim=16)

    X = jax.random.normal(k_x, (N_NODES, INPUT_DIM), jnp.float32)
    edge_features = jax.random.uniform(k_ef, (N_EDGES, EDGE_FEATURE_DIM),
                                       jnp.float32, 0.5, 1.5)
    edge_index = jnp.stack(
        [jax.random.randint(k_e0, (N_EDGES,), 0, N_NODES),
         jax.random.randint(k_e1, (N_EDGES,), 0, N_NODES)], axis=1).astype(jnp.int32)

    pred = gnn_track_linking_forward(params, X, edge_features, edge_index)
    pred = jax.block_until_ready(pred)
    assert pred.shape == (N_EDGES, 1)
    assert bool(jnp.all(jnp.isfinite(pred)))
    print("KERNEL_OK")
</pallas_src>

<mosaic_0001>
module attributes {stable_mosaic.version = 11 : i64} {
  func.func @_fused_forward_kernel(%arg0: i32, %arg1: memref<12x19xf32, #tpu.memory_space<vmem>>, %arg2: memref<20x12xf32, #tpu.memory_space<vmem>>, %arg3: memref<20x1xi32, #tpu.memory_space<vmem>>, %arg4: memref<20x1xi32, #tpu.memory_space<vmem>>, %arg5: memref<1x19xf32, #tpu.memory_space<vmem>>, %arg6: memref<1x12xf32, #tpu.memory_space<vmem>>, %arg7: memref<19x16xf32, #tpu.memory_space<vmem>>, %arg8: memref<1x16xf32, #tpu.memory_space<vmem>>, %arg9: memref<16x16xf32, #tpu.memory_space<vmem>>, %arg10: memref<1x16xf32, #tpu.memory_space<vmem>>, %arg11: memref<12x16xf32, #tpu.memory_space<vmem>>, %arg12: memref<1x16xf32, #tpu.memory_space<vmem>>, %arg13: memref<16x16xf32, #tpu.memory_space<vmem>>, %arg14: memref<1x16xf32, #tpu.memory_space<vmem>>, %arg15: memref<16x32xf32, #tpu.memory_space<vmem>>, %arg16: memref<1x32xf32, #tpu.memory_space<vmem>>, %arg17: memref<32x2xf32, #tpu.memory_space<vmem>>, %arg18: memref<1x2xf32, #tpu.memory_space<vmem>>, %arg19: memref<32x32xf32, #tpu.memory_space<vmem>>, %arg20: memref<1x32xf32, #tpu.memory_space<vmem>>, %arg21: memref<32x16xf32, #tpu.memory_space<vmem>>, %arg22: memref<1x16xf32, #tpu.memory_space<vmem>>, %arg23: memref<32x32xf32, #tpu.memory_space<vmem>>, %arg24: memref<1x32xf32, #tpu.memory_space<vmem>>, %arg25: memref<32x16xf32, #tpu.memory_space<vmem>>, %arg26: memref<1x16xf32, #tpu.memory_space<vmem>>, %arg27: memref<60x16xf32, #tpu.memory_space<vmem>>, %arg28: memref<1x16xf32, #tpu.memory_space<vmem>>, %arg29: memref<1x16xf32, #tpu.memory_space<vmem>>, %arg30: memref<1x1xf32, #tpu.memory_space<vmem>>, %arg31: memref<1x20xf32, #tpu.memory_space<vmem>>) attributes {dimension_semantics = [#tpu.dimension_semantics<arbitrary>], iteration_bounds = array<i64: 1>, scalar_prefetch = 0 : i64, scratch_operands = 0 : i64, tpu.core_type = #tpu.core_type<tc>, window_params = [{pipeline_mode = #tpu.pipeline_mode<synchronous>, transform_indices = @transform_0, window_bounds = array<i64: 12, 19>}, {pipeline_mode = #tpu.pipeline_mode<synchronous>, transform_indices = @transform_1, window_bounds = array<i64: 20, 12>}, {pipeline_mode = #tpu.pipeline_mode<synchronous>, transform_indices = @transform_2, window_bounds = array<i64: 20, 1>}, {pipeline_mode = #tpu.pipeline_mode<synchronous>, transform_indices = @transform_3, window_bounds = array<i64: 20, 1>}, {pipeline_mode = #tpu.pipeline_mode<synchronous>, transform_indices = @transform_4, window_bounds = array<i64: 1, 19>}, {pipeline_mode = #tpu.pipeline_mode<synchronous>, transform_indices = @transform_5, window_bounds = array<i64: 1, 12>}, {pipeline_mode = #tpu.pipeline_mode<synchronous>, transform_indices = @transform_6, window_bounds = array<i64: 19, 16>}, {pipeline_mode = #tpu.pipeline_mode<synchronous>, transform_indices = @transform_7, window_bounds = array<i64: 1, 16>}, {pipeline_mode = #tpu.pipeline_mode<synchronous>, transform_indices = @transform_8, window_bounds = array<i64: 16, 16>}, {pipeline_mode = #tpu.pipeline_mode<synchronous>, transform_indices = @transform_9, window_bounds = array<i64: 1, 16>}, {pipeline_mode = #tpu.pipeline_mode<synchronous>, transform_indices = @transform_10, window_bounds = array<i64: 12, 16>}, {pipeline_mode = #tpu.pipeline_mode<synchronous>, transform_indices = @transform_11, window_bounds = array<i64: 1, 16>}, {pipeline_mode = #tpu.pipeline_mode<synchronous>, transform_indices = @transform_12, window_bounds = array<i64: 16, 16>}, {pipeline_mode = #tpu.pipeline_mode<synchronous>, transform_indices = @transform_13, window_bounds = array<i64: 1, 16>}, {pipeline_mode = #tpu.pipeline_mode<synchronous>, transform_indices = @transform_14, window_bounds = array<i64: 16, 32>}, {pipeline_mode = #tpu.pipeline_mode<synchronous>, transform_indices = @transform_15, window_bounds = array<i64: 1, 32>}, {pipeline_mode = #tpu.pipeline_mode<synchronous>, transform_indices = @transform_16, window_bounds = array<i64: 32, 2>}, {pipeline_mode = #tpu.pipeline_mode<synchronous>, transform_indices = @transform_17, window_bounds = array<i64: 1, 2>}, {pipeline_mode = #tpu.pipeline_mode<synchronous>, transform_indices = @transform_18, window_bounds = array<i64: 32, 32>}, {pipeline_mode = #tpu.pipeline_mode<synchronous>, transform_indices = @transform_19, window_bounds = array<i64: 1, 32>}, {pipeline_mode = #tpu.pipeline_mode<synchronous>, transform_indices = @transform_20, window_bounds = array<i64: 32, 16>}, {pipeline_mode = #tpu.pipeline_mode<synchronous>, transform_indices = @transform_21, window_bounds = array<i64: 1, 16>}, {pipeline_mode = #tpu.pipeline_mode<synchronous>, transform_indices = @transform_22, window_bounds = array<i64: 32, 32>}, {pipeline_mode = #tpu.pipeline_mode<synchronous>, transform_indices = @transform_23, window_bounds = array<i64: 1, 32>}, {pipeline_mode = #tpu.pipeline_mode<synchronous>, transform_indices = @transform_24, window_bounds = array<i64: 32, 16>}, {pipeline_mode = #tpu.pipeline_mode<synchronous>, transform_indices = @transform_25, window_bounds = array<i64: 1, 16>}, {pipeline_mode = #tpu.pipeline_mode<synchronous>, transform_indices = @transform_26, window_bounds = array<i64: 60, 16>}, {pipeline_mode = #tpu.pipeline_mode<synchronous>, transform_indices = @transform_27, window_bounds = array<i64: 1, 16>}, {pipeline_mode = #tpu.pipeline_mode<synchronous>, transform_indices = @transform_28, window_bounds = array<i64: 1, 16>}, {pipeline_mode = #tpu.pipeline_mode<synchronous>, transform_indices = @transform_29, window_bounds = array<i64: 1, 1>}, {pipeline_mode = #tpu.pipeline_mode<synchronous>, transform_indices = @transform_30, window_bounds = array<i64: 1, 20>}]} {
    %c0 = arith.constant 0 : index
    %c0_0 = arith.constant 0 : index
    %0 = vector.load %arg2[%c0, %c0_0] : memref<20x12xf32, #tpu.memory_space<vmem>>, vector<20x12xf32>
    %c0_1 = arith.constant 0 : index
    %c0_2 = arith.constant 0 : index
    %1 = vector.load %arg6[%c0_1, %c0_2] : memref<1x12xf32, #tpu.memory_space<vmem>>, vector<1x12xf32>
    %2 = vector.broadcast %1 : vector<1x12xf32> to vector<20x12xf32>
    %3 = arith.mulf %0, %2 : vector<20x12xf32>
    %cst = arith.constant 9.99999974E-5 : f32
    %4 = vector.broadcast %cst : f32 to vector<20x12xf32>
    %5 = arith.addf %0, %4 : vector<20x12xf32>
    %6 = tpu.reciprocal %5 {approx = true} : vector<20x12xf32> -> vector<20x12xf32>
    %7 = arith.mulf %3, %6 : vector<20x12xf32>
    %c0_3 = arith.constant 0 : index
    %c0_4 = arith.constant 0 : index
    %8 = vector.load %arg1[%c0_3, %c0_4] : memref<12x19xf32, #tpu.memory_space<vmem>>, vector<12x19xf32>
    %c0_5 = arith.constant 0 : index
    %c0_6 = arith.constant 0 : index
    %9 = vector.load %arg5[%c0_5, %c0_6] : memref<1x19xf32, #tpu.memory_space<vmem>>, vector<1x19xf32>
    %10 = vector.broadcast %9 : vector<1x19xf32> to vector<12x19xf32>
    %11 = arith.divf %8, %10 : vector<12x19xf32>
    %12 = tpu.iota {dimensions = array<i32: 1>} : vector<20x12xi32>
    %c0_7 = arith.constant 0 : index
    %c0_8 = arith.constant 0 : index
    %13 = vector.load %arg3[%c0_7, %c0_8] : memref<20x1xi32, #tpu.memory_space<vmem>>, vector<20x1xi32>
    %14 = vector.broadcast %13 : vector<20x1xi32> to vector<20x12xi32>
    %15 = arith.cmpi eq, %14, %12 : vector<20x12xi32>
    %16 = arith.extui %15 : vector<20x12xi1> to vector<20x12xi32>
    %17 = arith.sitofp %16 : vector<20x12xi32> to vector<20x12xf32>
    %18 = arith.truncf %17 : vector<20x12xf32> to vector<20x12xbf16>
    %c0_9 = arith.constant 0 : index
    %c0_10 = arith.constant 0 : index
    %19 = vector.load %arg4[%c0_9, %c0_10] : memref<20x1xi32, #tpu.memory_space<vmem>>, vector<20x1xi32>
    %20 = vector.broadcast %19 : vector<20x1xi32> to vector<20x12xi32>
    %21 = arith.cmpi eq, %20, %12 : vector<20x12xi32>
    %22 = arith.extui %21 : vector<20x12xi1> to vector<20x12xi32>
    %23 = arith.sitofp %22 : vector<20x12xi32> to vector<20x12xf32>
    %24 = arith.truncf %23 : vector<20x12xf32> to vector<20x12xbf16>
    %c0_11 = arith.constant 0 : index
    %c0_12 = arith.constant 0 : index
    %25 = vector.load %arg11[%c0_11, %c0_12] : memref<12x16xf32, #tpu.memory_space<vmem>>, vector<12x16xf32>
    %26 = arith.truncf %7 : vector<20x12xf32> to vector<20x12xbf16>
    %27 = arith.truncf %25 : vector<12x16xf32> to vector<12x16xbf16>
    %cst_13 = arith.constant dense<0.000000e+00> : vector<20x16xf32>
    %28 = tpu.matmul %26, %27, %cst_13 {dimension_numbers = #tpu.dot_dimension_numbers<[1], [0], [0], [1], [0, 0, 1, 1], [], []>} : vector<20x12xbf16>, vector<12x16xbf16>, vector<20x16xf32> -> vector<20x16xf32>
    %c0_14 = arith.constant 0 : index
    %c0_15 = arith.constant 0 : index
    %29 = vector.load %arg12[%c0_14, %c0_15] : memref<1x16xf32, #tpu.memory_space<vmem>>, vector<1x16xf32>
    %30 = vector.broadcast %29 : vector<1x16xf32> to vector<20x16xf32>
    %31 = arith.addf %28, %30 : vector<20x16xf32>
    %cst_16 = arith.constant 0.000000e+00 : f32
    %32 = vector.broadcast %cst_16 : f32 to vector<20x16xf32>
    %33 = arith.cmpf oge, %31, %32 : vector<20x16xf32>
    %cst_17 = arith.constant 0.00999999977 : f32
    %34 = vector.broadcast %cst_17 : f32 to vector<20x16xf32>
    %35 = arith.mulf %34, %31 : vector<20x16xf32>
    %36 = arith.select %33, %31, %35 : vector<20x16xi1>, vector<20x16xf32>
    %c0_18 = arith.constant 0 : index
    %c0_19 = arith.constant 0 : index
    %37 = vector.load %arg13[%c0_18, %c0_19] : memref<16x16xf32, #tpu.memory_space<vmem>>, vector<16x16xf32>
    %38 = arith.truncf %36 : vector<20x16xf32> to vector<20x16xbf16>
    %39 = arith.truncf %37 : vector<16x16xf32> to vector<16x16xbf16>
    %cst_20 = arith.constant dense<0.000000e+00> : vector<20x16xf32>
    %40 = tpu.matmul %38, %39, %cst_20 {dimension_numbers = #tpu.dot_dimension_numbers<[1], [0], [0], [1], [0, 0, 1, 1], [], []>} : vector<20x16xbf16>, vector<16x16xbf16>, vector<20x16xf32> -> vector<20x16xf32>
    %c0_21 = arith.constant 0 : index
    %c0_22 = arith.constant 0 : index
    %41 = vector.load %arg14[%c0_21, %c0_22] : memref<1x16xf32, #tpu.memory_space<vmem>>, vector<1x16xf32>
    %42 = vector.broadcast %41 : vector<1x16xf32> to vector<20x16xf32>
    %43 = arith.addf %40, %42 : vector<20x16xf32>
    %cst_23 = arith.constant 0.000000e+00 : f32
    %44 = vector.broadcast %cst_23 : f32 to vector<20x16xf32>
    %45 = arith.cmpf oge, %43, %44 : vector<20x16xf32>
    %cst_24 = arith.constant 0.00999999977 : f32
    %46 = vector.broadcast %cst_24 : f32 to vector<20x16xf32>
    %47 = arith.mulf %46, %43 : vector<20x16xf32>
    %48 = arith.select %45, %43, %47 : vector<20x16xi1>, vector<20x16xf32>
    %c0_25 = arith.constant 0 : index
    %c0_26 = arith.constant 0 : index
    %49 = vector.load %arg15[%c0_25, %c0_26] : memref<16x32xf32, #tpu.memory_space<vmem>>, vector<16x32xf32>
    %50 = arith.truncf %48 : vector<20x16xf32> to vector<20x16xbf16>
    %51 = arith.truncf %49 : vector<16x32xf32> to vector<16x32xbf16>
    %cst_27 = arith.constant dense<0.000000e+00> : vector<20x32xf32>
    %52 = tpu.matmul %50, %51, %cst_27 {dimension_numbers = #tpu.dot_dimension_numbers<[1], [0], [0], [1], [0, 0, 1, 1], [], []>} : vector<20x16xbf16>, vector<16x32xbf16>, vector<20x32xf32> -> vector<20x32xf32>
    %c0_28 = arith.constant 0 : index
    %c0_29 = arith.constant 0 : index
    %53 = vector.load %arg16[%c0_28, %c0_29] : memref<1x32xf32, #tpu.memory_space<vmem>>, vector<1x32xf32>
    %54 = vector.broadcast %53 : vector<1x32xf32> to vector<20x32xf32>
    %55 = arith.addf %52, %54 : vector<20x32xf32>
    %cst_30 = arith.constant 0.000000e+00 : f32
    %56 = vector.broadcast %cst_30 : f32 to vector<20x32xf32>
    %57 = arith.cmpf oge, %55, %56 : vector<20x32xf32>
    %cst_31 = arith.constant 0.00999999977 : f32
    %58 = vector.broadcast %cst_31 : f32 to vector<20x32xf32>
    %59 = arith.mulf %58, %55 : vector<20x32xf32>
    %60 = arith.select %57, %55, %59 : vector<20x32xi1>, vector<20x32xf32>
    %c0_32 = arith.constant 0 : index
    %c0_33 = arith.constant 0 : index
    %61 = vector.load %arg17[%c0_32, %c0_33] : memref<32x2xf32, #tpu.memory_space<vmem>>, vector<32x2xf32>
    %62 = arith.truncf %60 : vector<20x32xf32> to vector<20x32xbf16>
    %63 = arith.truncf %61 : vector<32x2xf32> to vector<32x2xbf16>
    %cst_34 = arith.constant dense<0.000000e+00> : vector<20x2xf32>
    %64 = tpu.matmul %62, %63, %cst_34 {dimension_numbers = #tpu.dot_dimension_numbers<[1], [0], [0], [1], [0, 0, 1, 1], [], []>} : vector<20x32xbf16>, vector<32x2xbf16>, vector<20x2xf32> -> vector<20x2xf32>
    %c0_35 = arith.constant 0 : index
    %c0_36 = arith.constant 0 : index
    %65 = vector.load %arg18[%c0_35, %c0_36] : memref<1x2xf32, #tpu.memory_space<vmem>>, vector<1x2xf32>
    %66 = vector.broadcast %65 : vector<1x2xf32> to vector<20x2xf32>
    %67 = arith.addf %64, %66 : vector<20x2xf32>
    %68 = arith.negf %67 : vector<20x2xf32>
    %69 = math.exp %68 : vector<20x2xf32>
    %cst_37 = arith.constant 1.000000e+00 : f32
    %70 = vector.broadcast %cst_37 : f32 to vector<20x2xf32>
    %71 = arith.addf %70, %69 : vector<20x2xf32>
    %72 = arith.divf %70, %71 : vector<20x2xf32>
    %73 = vector.extract_strided_slice %72 {offsets = [0, 0], sizes = [20, 1], strides = [1, 1]} : vector<20x2xf32> to vector<20x1xf32>
    %74 = vector.extract_strided_slice %72 {offsets = [0, 1], sizes = [20, 1], strides = [1, 1]} : vector<20x2xf32> to vector<20x1xf32>
    %c0_38 = arith.constant 0 : index
    %c0_39 = arith.constant 0 : index
    %75 = vector.load %arg7[%c0_38, %c0_39] : memref<19x16xf32, #tpu.memory_space<vmem>>, vector<19x16xf32>
    %76 = arith.truncf %11 : vector<12x19xf32> to vector<12x19xbf16>
    %77 = arith.truncf %75 : vector<19x16xf32> to vector<19x16xbf16>
    %cst_40 = arith.constant dense<0.000000e+00> : vector<12x16xf32>
    %78 = tpu.matmul %76, %77, %cst_40 {dimension_numbers = #tpu.dot_dimension_numbers<[1], [0], [0], [1], [0, 0, 1, 1], [], []>} : vector<12x19xbf16>, vector<19x16xbf16>, vector<12x16xf32> -> vector<12x16xf32>
    %c0_41 = arith.constant 0 : index
    %c0_42 = arith.constant 0 : index
    %79 = vector.load %arg8[%c0_41, %c0_42] : memref<1x16xf32, #tpu.memory_space<vmem>>, vector<1x16xf32>
    %80 = vector.broadcast %79 : vector<1x16xf32> to vector<12x16xf32>
    %81 = arith.addf %78, %80 : vector<12x16xf32>
    %cst_43 = arith.constant 0.000000e+00 : f32
    %82 = vector.broadcast %cst_43 : f32 to vector<12x16xf32>
    %83 = arith.cmpf oge, %81, %82 : vector<12x16xf32>
    %cst_44 = arith.constant 0.00999999977 : f32
    %84 = vector.broadcast %cst_44 : f32 to vector<12x16xf32>
    %85 = arith.mulf %84, %81 : vector<12x16xf32>
    %86 = arith.select %83, %81, %85 : vector<12x16xi1>, vector<12x16xf32>
    %c0_45 = arith.constant 0 : index
    %c0_46 = arith.constant 0 : index
    %87 = vector.load %arg9[%c0_45, %c0_46] : memref<16x16xf32, #tpu.memory_space<vmem>>, vector<16x16xf32>
    %88 = arith.truncf %86 : vector<12x16xf32> to vector<12x16xbf16>
    %89 = arith.truncf %87 : vector<16x16xf32> to vector<16x16xbf16>
    %cst_47 = arith.constant dense<0.000000e+00> : vector<12x16xf32>
    %90 = tpu.matmul %88, %89, %cst_47 {dimension_numbers = #tpu.dot_dimension_numbers<[1], [0], [0], [1], [0, 0, 1, 1], [], []>} : vector<12x16xbf16>, vector<16x16xbf16>, vector<12x16xf32> -> vector<12x16xf32>
    %c0_48 = arith.constant 0 : index
    %c0_49 = arith.constant 0 : index
    %91 = vector.load %arg10[%c0_48, %c0_49] : memref<1x16xf32, #tpu.memory_space<vmem>>, vector<1x16xf32>
    %92 = vector.broadcast %91 : vector<1x16xf32> to vector<12x16xf32>
    %93 = arith.addf %90, %92 : vector<12x16xf32>
    %cst_50 = arith.constant 0.000000e+00 : f32
    %94 = vector.broadcast %cst_50 : f32 to vector<12x16xf32>
    %95 = arith.cmpf oge, %93, %94 : vector<12x16xf32>
    %cst_51 = arith.constant 0.00999999977 : f32
    %96 = vector.broadcast %cst_51 : f32 to vector<12x16xf32>
    %97 = arith.mulf %96, %93 : vector<12x16xf32>
    %98 = arith.select %95, %93, %97 : vector<12x16xi1>, vector<12x16xf32>
    %cst_52 = arith.constant 0.000000e+00 : f32
    %99 = vector.broadcast %cst_52 : f32 to vector<12x16xf32>
    %100 = arith.truncf %98 : vector<12x16xf32> to vector<12x16xbf16>
    %cst_53 = arith.constant dense<0.000000e+00> : vector<20x16xf32>
    %101 = tpu.matmul %18, %100, %cst_53 {dimension_numbers = #tpu.dot_dimension_numbers<[1], [0], [0], [1], [0, 0, 1, 1], [], []>} : vector<20x12xbf16>, vector<12x16xbf16>, vector<20x16xf32> -> vector<20x16xf32>
    %cst_54 = arith.constant dense<0.000000e+00> : vector<20x16xf32>
    %102 = tpu.matmul %24, %100, %cst_54 {dimension_numbers = #tpu.dot_dimension_numbers<[1], [0], [0], [1], [0, 0, 1, 1], [], []>} : vector<20x12xbf16>, vector<12x16xbf16>, vector<20x16xf32> -> vector<20x16xf32>
    %103 = tpu.concatenate %98, %101, %102 in 0 : vector<12x16xf32>, vector<20x16xf32>, vector<20x16xf32> -> vector<52x16xf32>
    %104 = arith.subf %102, %101 : vector<20x16xf32>
    %105 = arith.subf %101, %102 : vector<20x16xf32>
    %106 = tpu.concatenate %99, %104, %105 in 0 : vector<12x16xf32>, vector<20x16xf32>, vector<20x16xf32> -> vector<52x16xf32>
    %107 = tpu.concatenate %103, %106 in 1 : vector<52x16xf32>, vector<52x16xf32> -> vector<52x32xf32>
    %c0_55 = arith.constant 0 : index
    %c0_56 = arith.constant 0 : index
    %108 = vector.load %arg19[%c0_55, %c0_56] : memref<32x32xf32, #tpu.memory_space<vmem>>, vector<32x32xf32>
    %109 = arith.truncf %107 : vector<52x32xf32> to vector<52x32xbf16>
    %110 = arith.truncf %108 : vector<32x32xf32> to vector<32x32xbf16>
    %cst_57 = arith.constant dense<0.000000e+00> : vector<52x32xf32>
    %111 = tpu.matmul %109, %110, %cst_57 {dimension_numbers = #tpu.dot_dimension_numbers<[1], [0], [0], [1], [0, 0, 1, 1], [], []>} : vector<52x32xbf16>, vector<32x32xbf16>, vector<52x32xf32> -> vector<52x32xf32>
    %c0_58 = arith.constant 0 : index
    %c0_59 = arith.constant 0 : index
    %112 = vector.load %arg20[%c0_58, %c0_59] : memref<1x32xf32, #tpu.memory_space<vmem>>, vector<1x32xf32>
    %113 = vector.broadcast %112 : vector<1x32xf32> to vector<52x32xf32>
    %114 = arith.addf %111, %113 : vector<52x32xf32>
    %cst_60 = arith.constant 0.000000e+00 : f32
    %115 = vector.broadcast %cst_60 : f32 to vector<52x32xf32>
    %116 = arith.cmpf oge, %114, %115 : vector<52x32xf32>
    %cst_61 = arith.constant 0.00999999977 : f32
    %117 = vector.broadcast %cst_61 : f32 to vector<52x32xf32>
    %118 = arith.mulf %117, %114 : vector<52x32xf32>
    %119 = arith.select %116, %114, %118 : vector<52x32xi1>, vector<52x32xf32>
    %c0_62 = arith.constant 0 : index
    %c0_63 = arith.constant 0 : index
    %120 = vector.load %arg21[%c0_62, %c0_63] : memref<32x16xf32, #tpu.memory_space<vmem>>, vector<32x16xf32>
    %121 = arith.truncf %119 : vector<52x32xf32> to vector<52x32xbf16>
    %122 = arith.truncf %120 : vector<32x16xf32> to vector<32x16xbf16>
    %cst_64 = arith.constant dense<0.000000e+00> : vector<52x16xf32>
    %123 = tpu.matmul %121, %122, %cst_64 {dimension_numbers = #tpu.dot_dimension_numbers<[1], [0], [0], [1], [0, 0, 1, 1], [], []>} : vector<52x32xbf16>, vector<32x16xbf16>, vector<52x16xf32> -> vector<52x16xf32>
    %c0_65 = arith.constant 0 : index
    %c0_66 = arith.constant 0 : index
    %124 = vector.load %arg22[%c0_65, %c0_66] : memref<1x16xf32, #tpu.memory_space<vmem>>, vector<1x16xf32>
    %125 = vector.broadcast %124 : vector<1x16xf32> to vector<52x16xf32>
    %126 = arith.addf %123, %125 : vector<52x16xf32>
    %cst_67 = arith.constant 0.000000e+00 : f32
    %127 = vector.broadcast %cst_67 : f32 to vector<52x16xf32>
    %128 = arith.cmpf oge, %126, %127 : vector<52x16xf32>
    %cst_68 = arith.constant 0.00999999977 : f32
    %129 = vector.broadcast %cst_68 : f32 to vector<52x16xf32>
    %130 = arith.mulf %129, %126 : vector<52x16xf32>
    %131 = arith.select %128, %126, %130 : vector<52x16xi1>, vector<52x16xf32>
    %132 = vector.extract_strided_slice %131 {offsets = [0, 0], sizes = [12, 16], strides = [1, 1]} : vector<52x16xf32> to vector<12x16xf32>
    %133 = vector.extract_strided_slice %131 {offsets = [12, 0], sizes = [20, 16], strides = [1, 1]} : vector<52x16xf32> to vector<20x16xf32>
    %134 = vector.broadcast %73 : vector<20x1xf32> to vector<20x16xf32>
    %135 = arith.mulf %134, %133 : vector<20x16xf32>
    %136 = vector.extract_strided_slice %131 {offsets = [32, 0], sizes = [20, 16], strides = [1, 1]} : vector<52x16xf32> to vector<20x16xf32>
    %137 = vector.broadcast %74 : vector<20x1xf32> to vector<20x16xf32>
    %138 = arith.mulf %137, %136 : vector<20x16xf32>
    %139 = arith.truncf %135 : vector<20x16xf32> to vector<20x16xbf16>
    %cst_69 = arith.constant dense<0.000000e+00> : vector<12x16xf32>
    %140 = tpu.matmul %18, %139, %cst_69 {dimension_numbers = #tpu.dot_dimension_numbers<[0], [0], [1], [1], [0, 1, 1, 1], [], []>} : vector<20x12xbf16>, vector<20x16xbf16>, vector<12x16xf32> -> vector<12x16xf32>
    %141 = arith.addf %132, %140 : vector<12x16xf32>
    %142 = arith.truncf %138 : vector<20x16xf32> to vector<20x16xbf16>
    %cst_70 = arith.constant dense<0.000000e+00> : vector<12x16xf32>
    %143 = tpu.matmul %24, %142, %cst_70 {dimension_numbers = #tpu.dot_dimension_numbers<[0], [0], [1], [1], [0, 1, 1, 1], [], []>} : vector<20x12xbf16>, vector<20x16xbf16>, vector<12x16xf32> -> vector<12x16xf32>
    %144 = arith.addf %141, %143 : vector<12x16xf32>
    %145 = arith.truncf %144 : vector<12x16xf32> to vector<12x16xbf16>
    %cst_71 = arith.constant dense<0.000000e+00> : vector<20x16xf32>
    %146 = tpu.matmul %18, %145, %cst_71 {dimension_numbers = #tpu.dot_dimension_numbers<[1], [0], [0], [1], [0, 0, 1, 1], [], []>} : vector<20x12xbf16>, vector<12x16xbf16>, vector<20x16xf32> -> vector<20x16xf32>
    %cst_72 = arith.constant dense<0.000000e+00> : vector<20x16xf32>
    %147 = tpu.matmul %24, %145, %cst_72 {dimension_numbers = #tpu.dot_dimension_numbers<[1], [0], [0], [1], [0, 0, 1, 1], [], []>} : vector<20x12xbf16>, vector<12x16xbf16>, vector<20x16xf32> -> vector<20x16xf32>
    %148 = tpu.concatenate %144, %146, %147 in 0 : vector<12x16xf32>, vector<20x16xf32>, vector<20x16xf32> -> vector<52x16xf32>
    %149 = arith.subf %147, %146 : vector<20x16xf32>
    %150 = arith.subf %146, %147 : vector<20x16xf32>
    %151 = tpu.concatenate %99, %149, %150 in 0 : vector<12x16xf32>, vector<20x16xf32>, vector<20x16xf32> -> vector<52x16xf32>
    %152 = tpu.concatenate %148, %151 in 1 : vector<52x16xf32>, vector<52x16xf32> -> vector<52x32xf32>
    %c0_73 = arith.constant 0 : index
    %c0_74 = arith.constant 0 : index
    %153 = vector.load %arg23[%c0_73, %c0_74] : memref<32x32xf32, #tpu.memory_space<vmem>>, vector<32x32xf32>
    %154 = arith.truncf %152 : vector<52x32xf32> to vector<52x32xbf16>
    %155 = arith.truncf %153 : vector<32x32xf32> to vector<32x32xbf16>
    %cst_75 = arith.constant dense<0.000000e+00> : vector<52x32xf32>
    %156 = tpu.matmul %154, %155, %cst_75 {dimension_numbers = #tpu.dot_dimension_numbers<[1], [0], [0], [1], [0, 0, 1, 1], [], []>} : vector<52x32xbf16>, vector<32x32xbf16>, vector<52x32xf32> -> vector<52x32xf32>
    %c0_76 = arith.constant 0 : index
    %c0_77 = arith.constant 0 : index
    %157 = vector.load %arg24[%c0_76, %c0_77] : memref<1x32xf32, #tpu.memory_space<vmem>>, vector<1x32xf32>
    %158 = vector.broadcast %157 : vector<1x32xf32> to vector<52x32xf32>
    %159 = arith.addf %156, %158 : vector<52x32xf32>
    %cst_78 = arith.constant 0.000000e+00 : f32
    %160 = vector.broadcast %cst_78 : f32 to vector<52x32xf32>
    %161 = arith.cmpf oge, %159, %160 : vector<52x32xf32>
    %cst_79 = arith.constant 0.00999999977 : f32
    %162 = vector.broadcast %cst_79 : f32 to vector<52x32xf32>
    %163 = arith.mulf %162, %159 : vector<52x32xf32>
    %164 = arith.select %161, %159, %163 : vector<52x32xi1>, vector<52x32xf32>
    %c0_80 = arith.constant 0 : index
    %c0_81 = arith.constant 0 : index
    %165 = vector.load %arg25[%c0_80, %c0_81] : memref<32x16xf32, #tpu.memory_space<vmem>>, vector<32x16xf32>
    %166 = arith.truncf %164 : vector<52x32xf32> to vector<52x32xbf16>
    %167 = arith.truncf %165 : vector<32x16xf32> to vector<32x16xbf16>
    %cst_82 = arith.constant dense<0.000000e+00> : vector<52x16xf32>
    %168 = tpu.matmul %166, %167, %cst_82 {dimension_numbers = #tpu.dot_dimension_numbers<[1], [0], [0], [1], [0, 0, 1, 1], [], []>} : vector<52x32xbf16>, vector<32x16xbf16>, vector<52x16xf32> -> vector<52x16xf32>
    %c0_83 = arith.constant 0 : index
    %c0_84 = arith.constant 0 : index
    %169 = vector.load %arg26[%c0_83, %c0_84] : memref<1x16xf32, #tpu.memory_space<vmem>>, vector<1x16xf32>
    %170 = vector.broadcast %169 : vector<1x16xf32> to vector<52x16xf32>
    %171 = arith.addf %168, %170 : vector<52x16xf32>
    %cst_85 = arith.constant 0.000000e+00 : f32
    %172 = vector.broadcast %cst_85 : f32 to vector<52x16xf32>
    %173 = arith.cmpf oge, %171, %172 : vector<52x16xf32>
    %cst_86 = arith.constant 0.00999999977 : f32
    %174 = vector.broadcast %cst_86 : f32 to vector<52x16xf32>
    %175 = arith.mulf %174, %171 : vector<52x16xf32>
    %176 = arith.select %173, %171, %175 : vector<52x16xi1>, vector<52x16xf32>
    %177 = vector.extract_strided_slice %176 {offsets = [0, 0], sizes = [12, 16], strides = [1, 1]} : vector<52x16xf32> to vector<12x16xf32>
    %178 = vector.extract_strided_slice %176 {offsets = [12, 0], sizes = [20, 16], strides = [1, 1]} : vector<52x16xf32> to vector<20x16xf32>
    %179 = vector.broadcast %73 : vector<20x1xf32> to vector<20x16xf32>
    %180 = arith.mulf %179, %178 : vector<20x16xf32>
    %181 = vector.extract_strided_slice %176 {offsets = [32, 0], sizes = [20, 16], strides = [1, 1]} : vector<52x16xf32> to vector<20x16xf32>
    %182 = vector.broadcast %74 : vector<20x1xf32> to vector<20x16xf32>
    %183 = arith.mulf %182, %181 : vector<20x16xf32>
    %184 = arith.truncf %180 : vector<20x16xf32> to vector<20x16xbf16>
    %cst_87 = arith.constant dense<0.000000e+00> : vector<12x16xf32>
    %185 = tpu.matmul %18, %184, %cst_87 {dimension_numbers = #tpu.dot_dimension_numbers<[0], [0], [1], [1], [0, 1, 1, 1], [], []>} : vector<20x12xbf16>, vector<20x16xbf16>, vector<12x16xf32> -> vector<12x16xf32>
    %186 = arith.addf %177, %185 : vector<12x16xf32>
    %187 = arith.truncf %183 : vector<20x16xf32> to vector<20x16xbf16>
    %cst_88 = arith.constant dense<0.000000e+00> : vector<12x16xf32>
    %188 = tpu.matmul %24, %187, %cst_88 {dimension_numbers = #tpu.dot_dimension_numbers<[0], [0], [1], [1], [0, 1, 1, 1], [], []>} : vector<20x12xbf16>, vector<20x16xbf16>, vector<12x16xf32> -> vector<12x16xf32>
    %189 = arith.addf %186, %188 : vector<12x16xf32>
    %190 = arith.truncf %189 : vector<12x16xf32> to vector<12x16xbf16>
    %cst_89 = arith.constant dense<0.000000e+00> : vector<20x16xf32>
    %191 = tpu.matmul %18, %190, %cst_89 {dimension_numbers = #tpu.dot_dimension_numbers<[1], [0], [0], [1], [0, 0, 1, 1], [], []>} : vector<20x12xbf16>, vector<12x16xbf16>, vector<20x16xf32> -> vector<20x16xf32>
    %cst_90 = arith.constant dense<0.000000e+00> : vector<20x16xf32>
    %192 = tpu.matmul %24, %190, %cst_90 {dimension_numbers = #tpu.dot_dimension_numbers<[1], [0], [0], [1], [0, 0, 1, 1], [], []>} : vector<20x12xbf16>, vector<12x16xbf16>, vector<20x16xf32> -> vector<20x16xf32>
    %193 = tpu.concatenate %191, %192, %48, %7 in 1 : vector<20x16xf32>, vector<20x16xf32>, vector<20x16xf32>, vector<20x12xf32> -> vector<20x60xf32>
    %c0_91 = arith.constant 0 : index
    %c0_92 = arith.constant 0 : index
    %194 = vector.load %arg27[%c0_91, %c0_92] : memref<60x16xf32, #tpu.memory_space<vmem>>, vector<60x16xf32>
    %195 = arith.truncf %193 : vector<20x60xf32> to vector<20x60xbf16>
    %196 = arith.truncf %194 : vector<60x16xf32> to vector<60x16xbf16>
    %cst_93 = arith.constant dense<0.000000e+00> : vector<20x16xf32>
    %197 = tpu.matmul %195, %196, %cst_93 {dimension_numbers = #tpu.dot_dimension_numbers<[1], [0], [0], [1], [0, 0, 1, 1], [], []>} : vector<20x60xbf16>, vector<60x16xbf16>, vector<20x16xf32> -> vector<20x16xf32>
    %c0_94 = arith.constant 0 : index
    %c0_95 = arith.constant 0 : index
    %198 = vector.load %arg28[%c0_94, %c0_95] : memref<1x16xf32, #tpu.memory_space<vmem>>, vector<1x16xf32>
    %199 = vector.broadcast %198 : vector<1x16xf32> to vector<20x16xf32>
    %200 = arith.addf %197, %199 : vector<20x16xf32>
    %cst_96 = arith.constant 0.000000e+00 : f32
    %201 = vector.broadcast %cst_96 : f32 to vector<20x16xf32>
    %202 = arith.cmpf oge, %200, %201 : vector<20x16xf32>
    %cst_97 = arith.constant 0.00999999977 : f32
    %203 = vector.broadcast %cst_97 : f32 to vector<20x16xf32>
    %204 = arith.mulf %203, %200 : vector<20x16xf32>
    %205 = arith.select %202, %200, %204 : vector<20x16xi1>, vector<20x16xf32>
    %c0_98 = arith.constant 0 : index
    %c0_99 = arith.constant 0 : index
    %206 = vector.load %arg29[%c0_98, %c0_99] : memref<1x16xf32, #tpu.memory_space<vmem>>, vector<1x16xf32>
    %207 = arith.truncf %206 : vector<1x16xf32> to vector<1x16xbf16>
    %208 = arith.truncf %205 : vector<20x16xf32> to vector<20x16xbf16>
    %cst_100 = arith.constant dense<0.000000e+00> : vector<1x20xf32>
    %209 = tpu.matmul %207, %208, %cst_100 {dimension_numbers = #tpu.dot_dimension_numbers<[1], [1], [0], [0], [0, 0, 1, 0], [], []>} : vector<1x16xbf16>, vector<20x16xbf16>, vector<1x20xf32> -> vector<1x20xf32>
    %c0_101 = arith.constant 0 : index
    %c0_102 = arith.constant 0 : index
    %210 = vector.load %arg30[%c0_101, %c0_102] : memref<1x1xf32, #tpu.memory_space<vmem>>, vector<1x1xf32>
    %211 = vector.broadcast %210 : vector<1x1xf32> to vector<1x20xf32>
    %212 = arith.addf %209, %211 : vector<1x20xf32>
    %213 = arith.negf %212 : vector<1x20xf32>
    %214 = math.exp %213 : vector<1x20xf32>
    %cst_103 = arith.constant 1.000000e+00 : f32
    %215 = vector.broadcast %cst_103 : f32 to vector<1x20xf32>
    %216 = arith.addf %215, %214 : vector<1x20xf32>
    %217 = arith.divf %215, %216 : vector<1x20xf32>
    %c0_104 = arith.constant 0 : index
    %c0_105 = arith.constant 0 : index
    %218 = vector.load %arg31[%c0_104, %c0_105] : memref<1x20xf32, #tpu.memory_space<vmem>>, vector<1x20xf32>
    tpu.vector_store %arg31[%c0_104, %c0_105], %217 {strides = array<i32>} : memref<1x20xf32, #tpu.memory_space<vmem>>, vector<1x20xf32>,
    return
  }
  func.func @transform_0(%arg0: i32) -> (i32, i32) {
    %c0_i32 = arith.constant 0 : i32
    %c0_i32_0 = arith.constant 0 : i32
    %c0_i32_1 = arith.constant 0 : i32
    return %c0_i32, %c0_i32_0 : i32, i32
  }
  func.func @transform_1(%arg0: i32) -> (i32, i32) {
    %c0_i32 = arith.constant 0 : i32
    %c0_i32_0 = arith.constant 0 : i32
    %c0_i32_1 = arith.constant 0 : i32
    return %c0_i32, %c0_i32_0 : i32, i32
  }
  func.func @transform_2(%arg0: i32) -> (i32, i32) {
    %c0_i32 = arith.constant 0 : i32
    %c0_i32_0 = arith.constant 0 : i32
    %c0_i32_1 = arith.constant 0 : i32
    return %c0_i32, %c0_i32_0 : i32, i32
  }
  func.func @transform_3(%arg0: i32) -> (i32, i32) {
    %c0_i32 = arith.constant 0 : i32
    %c0_i32_0 = arith.constant 0 : i32
    %c0_i32_1 = arith.constant 0 : i32
    return %c0_i32, %c0_i32_0 : i32, i32
  }
  func.func @transform_4(%arg0: i32) -> (i32, i32) {
    %c0_i32 = arith.constant 0 : i32
    %c0_i32_0 = arith.constant 0 : i32
    %c0_i32_1 = arith.constant 0 : i32
    return %c0_i32, %c0_i32_0 : i32, i32
  }
  func.func @transform_5(%arg0: i32) -> (i32, i32) {
    %c0_i32 = arith.constant 0 : i32
    %c0_i32_0 = arith.constant 0 : i32
    %c0_i32_1 = arith.constant 0 : i32
    return %c0_i32, %c0_i32_0 : i32, i32
  }
  func.func @transform_6(%arg0: i32) -> (i32, i32) {
    %c0_i32 = arith.constant 0 : i32
    %c0_i32_0 = arith.constant 0 : i32
    %c0_i32_1 = arith.constant 0 : i32
    return %c0_i32, %c0_i32_0 : i32, i32
  }
  func.func @transform_7(%arg0: i32) -> (i32, i32) {
    %c0_i32 = arith.constant 0 : i32
    %c0_i32_0 = arith.constant 0 : i32
    %c0_i32_1 = arith.constant 0 : i32
    return %c0_i32, %c0_i32_0 : i32, i32
  }
  func.func @transform_8(%arg0: i32) -> (i32, i32) {
    %c0_i32 = arith.constant 0 : i32
    %c0_i32_0 = arith.constant 0 : i32
    %c0_i32_1 = arith.constant 0 : i32
    return %c0_i32, %c0_i32_0 : i32, i32
  }
  func.func @transform_9(%arg0: i32) -> (i32, i32) {
    %c0_i32 = arith.constant 0 : i32
    %c0_i32_0 = arith.constant 0 : i32
    %c0_i32_1 = arith.constant 0 : i32
    return %c0_i32, %c0_i32_0 : i32, i32
  }
  func.func @transform_10(%arg0: i32) -> (i32, i32) {
    %c0_i32 = arith.constant 0 : i32
    %c0_i32_0 = arith.constant 0 : i32
    %c0_i32_1 = arith.constant 0 : i32
    return %c0_i32, %c0_i32_0 : i32, i32
  }
  func.func @transform_11(%arg0: i32) -> (i32, i32) {
    %c0_i32 = arith.constant 0 : i32
    %c0_i32_0 = arith.constant 0 : i32
    %c0_i32_1 = arith.constant 0 : i32
    return %c0_i32, %c0_i32_0 : i32, i32
  }
  func.func @transform_12(%arg0: i32) -> (i32, i32) {
    %c0_i32 = arith.constant 0 : i32
    %c0_i32_0 = arith.constant 0 : i32
    %c0_i32_1 = arith.constant 0 : i32
    return %c0_i32, %c0_i32_0 : i32, i32
  }
  func.func @transform_13(%arg0: i32) -> (i32, i32) {
    %c0_i32 = arith.constant 0 : i32
    %c0_i32_0 = arith.constant 0 : i32
    %c0_i32_1 = arith.constant 0 : i32
    return %c0_i32, %c0_i32_0 : i32, i32
  }
  func.func @transform_14(%arg0: i32) -> (i32, i32) {
    %c0_i32 = arith.constant 0 : i32
    %c0_i32_0 = arith.constant 0 : i32
    %c0_i32_1 = arith.constant 0 : i32
    return %c0_i32, %c0_i32_0 : i32, i32
  }
  func.func @transform_15(%arg0: i32) -> (i32, i32) {
    %c0_i32 = arith.constant 0 : i32
    %c0_i32_0 = arith.constant 0 : i32
    %c0_i32_1 = arith.constant 0 : i32
    return %c0_i32, %c0_i32_0 : i32, i32
  }
  func.func @transform_16(%arg0: i32) -> (i32, i32) {
    %c0_i32 = arith.constant 0 : i32
    %c0_i32_0 = arith.constant 0 : i32
    %c0_i32_1 = arith.constant 0 : i32
    return %c0_i32, %c0_i32_0 : i32, i32
  }
  func.func @transform_17(%arg0: i32) -> (i32, i32) {
    %c0_i32 = arith.constant 0 : i32
    %c0_i32_0 = arith.constant 0 : i32
    %c0_i32_1 = arith.constant 0 : i32
    return %c0_i32, %c0_i32_0 : i32, i32
  }
  func.func @transform_18(%arg0: i32) -> (i32, i32) {
    %c0_i32 = arith.constant 0 : i32
    %c0_i32_0 = arith.constant 0 : i32
    %c0_i32_1 = arith.constant 0 : i32
    return %c0_i32, %c0_i32_0 : i32, i32
  }
  func.func @transform_19(%arg0: i32) -> (i32, i32) {
    %c0_i32 = arith.constant 0 : i32
    %c0_i32_0 = arith.constant 0 : i32
    %c0_i32_1 = arith.constant 0 : i32
    return %c0_i32, %c0_i32_0 : i32, i32
  }
  func.func @transform_20(%arg0: i32) -> (i32, i32) {
    %c0_i32 = arith.constant 0 : i32
    %c0_i32_0 = arith.constant 0 : i32
    %c0_i32_1 = arith.constant 0 : i32
    return %c0_i32, %c0_i32_0 : i32, i32
  }
  func.func @transform_21(%arg0: i32) -> (i32, i32) {
    %c0_i32 = arith.constant 0 : i32
    %c0_i32_0 = arith.constant 0 : i32
    %c0_i32_1 = arith.constant 0 : i32
    return %c0_i32, %c0_i32_0 : i32, i32
  }
  func.func @transform_22(%arg0: i32) -> (i32, i32) {
    %c0_i32 = arith.constant 0 : i32
    %c0_i32_0 = arith.constant 0 : i32
    %c0_i32_1 = arith.constant 0 : i32
    return %c0_i32, %c0_i32_0 : i32, i32
  }
  func.func @transform_23(%arg0: i32) -> (i32, i32) {
    %c0_i32 = arith.constant 0 : i32
    %c0_i32_0 = arith.constant 0 : i32
    %c0_i32_1 = arith.constant 0 : i32
    return %c0_i32, %c0_i32_0 : i32, i32
  }
  func.func @transform_24(%arg0: i32) -> (i32, i32) {
    %c0_i32 = arith.constant 0 : i32
    %c0_i32_0 = arith.constant 0 : i32
    %c0_i32_1 = arith.constant 0 : i32
    return %c0_i32, %c0_i32_0 : i32, i32
  }
  func.func @transform_25(%arg0: i32) -> (i32, i32) {
    %c0_i32 = arith.constant 0 : i32
    %c0_i32_0 = arith.constant 0 : i32
    %c0_i32_1 = arith.constant 0 : i32
    return %c0_i32, %c0_i32_0 : i32, i32
  }
  func.func @transform_26(%arg0: i32) -> (i32, i32) {
    %c0_i32 = arith.constant 0 : i32
    %c0_i32_0 = arith.constant 0 : i32
    %c0_i32_1 = arith.constant 0 : i32
    return %c0_i32, %c0_i32_0 : i32, i32
  }
  func.func @transform_27(%arg0: i32) -> (i32, i32) {
    %c0_i32 = arith.constant 0 : i32
    %c0_i32_0 = arith.constant 0 : i32
    %c0_i32_1 = arith.constant 0 : i32
    return %c0_i32, %c0_i32_0 : i32, i32
  }
  func.func @transform_28(%arg0: i32) -> (i32, i32) {
    %c0_i32 = arith.constant 0 : i32
    %c0_i32_0 = arith.constant 0 : i32
    %c0_i32_1 = arith.constant 0 : i32
    return %c0_i32, %c0_i32_0 : i32, i32
  }
  func.func @transform_29(%arg0: i32) -> (i32, i32) {
    %c0_i32 = arith.constant 0 : i32
    %c0_i32_0 = arith.constant 0 : i32
    %c0_i32_1 = arith.constant 0 : i32
    return %c0_i32, %c0_i32_0 : i32, i32
  }
  func.func @transform_30(%arg0: i32) -> (i32, i32) {
    %c0_i32 = arith.constant 0 : i32
    %c0_i32_0 = arith.constant 0 : i32
    %c0_i32_1 = arith.constant 0 : i32
    return %c0_i32, %c0_i32_0 : i32, i32
  }
}

</mosaic_0001>

<llo_original>
// kernel: tpu_custom_call.1
$region0: #{tpu_custom_call.1}
  #allocation0 [shape = 'u32[]', space=smem, size = 0x4, offset = 0x4, fixed_abs, tag = 'smem constant byte address 0x4 - core index']
  #allocation1 [shape = 'u32[144,128]{1,0:T(1,128)}', space=vmem, size = 0x12000, scoped, tag = 'internal scratch']
  #allocation2 [shape = 'f32[1,1]{1,0:T(1,128)S(1)}', space=vmem, size = 0x200, scoped, tag = 'scoped memory for tpu_custom_call.1']
  %s0 = inlined_call_operand.smem [shape: u32[31], index: -1, kind: input, shape index: {}]
  %s1 = sld [smem:[%s0]]
  %s2 = scalar_lea.smem %s0, 1
  %s3 = sld [smem:[%s2]]
  %s4 = scalar_lea.smem %s0, 2
  %s5 = sld [smem:[%s4]]
  %s6 = scalar_lea.smem %s0, 3
  %s7 = sld [smem:[%s6]]
  %s8 = scalar_lea.smem %s0, 4
  %s9 = sld [smem:[%s8]]
  %s10 = scalar_lea.smem %s0, 5
  %s11 = sld [smem:[%s10]]
  %s12 = scalar_lea.smem %s0, 6
  %s13 = sld [smem:[%s12]]
  %s14 = scalar_lea.smem %s0, 7
  %s15 = sld [smem:[%s14]]
  %s16 = scalar_lea.smem %s0, 8
  %s17 = sld [smem:[%s16]]
  %s18 = scalar_lea.smem %s0, 9
  %s19 = sld [smem:[%s18]]
  %s20 = scalar_lea.smem %s0, 10
  %s21 = sld [smem:[%s20]]
  %s22 = scalar_lea.smem %s0, 11
  %s23 = sld [smem:[%s22]]
  %s24 = scalar_lea.smem %s0, 12
  %s25 = sld [smem:[%s24]]
  %s26 = scalar_lea.smem %s0, 13
  %s27 = sld [smem:[%s26]]
  %s28 = scalar_lea.smem %s0, 14
  %s29 = sld [smem:[%s28]]
  %s30 = scalar_lea.smem %s0, 15
  %s31 = sld [smem:[%s30]]
  %s32 = scalar_lea.smem %s0, 16
  %s33 = sld [smem:[%s32]]
  %s34 = scalar_lea.smem %s0, 17
  %s35 = sld [smem:[%s34]]
  %s36 = scalar_lea.smem %s0, 18
  %s37 = sld [smem:[%s36]]
  %s38 = scalar_lea.smem %s0, 19
  %s39 = sld [smem:[%s38]]
  %s40 = scalar_lea.smem %s0, 20
  %s41 = sld [smem:[%s40]]
  %s42 = scalar_lea.smem %s0, 21
  %s43 = sld [smem:[%s42]]
  %s44 = scalar_lea.smem %s0, 22
  %s45 = sld [smem:[%s44]]
  %s46 = scalar_lea.smem %s0, 23
  %s47 = sld [smem:[%s46]]
  %s48 = scalar_lea.smem %s0, 24
  %s49 = sld [smem:[%s48]]
  %s50 = scalar_lea.smem %s0, 25
  %s51 = sld [smem:[%s50]]
  %s52 = scalar_lea.smem %s0, 26
  %s53 = sld [smem:[%s52]]
  %s54 = scalar_lea.smem %s0, 27
  %s55 = sld [smem:[%s54]]
  %s56 = scalar_lea.smem %s0, 28
  %s57 = sld [smem:[%s56]]
  %s58 = scalar_lea.smem %s0, 29
  %s59 = sld [smem:[%s58]]
  %s60 = scalar_lea.smem %s0, 30
  %s61 = sld [smem:[%s60]]
  %s62 = sld [smem:[#allocation0]]
  $region130: #{tpu_custom_call.1} parent=0
    _
  %s64 = ssub.s32 1, %s62
  %s65 = scalar_select 0, %s64, %s62
  %v66 = vstv %s59
  %67 = vst [vmem:[#allocation2] sm:$0x1] %v66
  $region1: #{tpu_custom_call.1} parent=0
    #allocation3 [shape = 'u8[512]{0}', space=vmem, size = 0x400, scoped, tag = 'output window, operand 0, single buffered']
    #allocation4 [shape = 's32[1]{0}', space=sflag, size = 0x4, scoped, tag = 'scoped memory for tpu_custom_call.1']
    %68 = vsyncpa [#allocation4], 0
    // Predicated region
    $region2: #{tpu_custom_call.1} parent=1 // pred_check
      _
    $region3: #{tpu_custom_call.1} parent=1 // pred_check_branch
      %70 = sbr.rel (0) target = $region5
    $region4: #{tpu_custom_call.1} parent=1 // pred_region
      _
    $region5: #{tpu_custom_call.1} parent=1 // pred_fallthru
      _
    // Predicated region
    $region6: #{tpu_custom_call.1} parent=1 // pred_check
      _
    $region7: #{tpu_custom_call.1} parent=1 // pred_check_branch
      %72 = sbr.rel (0) target = $region9
    $region8: #{tpu_custom_call.1} parent=1 // pred_region
      _
    $region9: #{tpu_custom_call.1} parent=1 // pred_fallthru
      _
    // Predicated region
    $region10: #{tpu_custom_call.1} parent=1 // pred_check
      _
    $region11: #{tpu_custom_call.1} parent=1 // pred_check_branch
      %74 = sbr.rel (0) target = $region13
    $region12: #{tpu_custom_call.1} parent=1 // pred_region
      _
    $region13: #{tpu_custom_call.1} parent=1 // pred_fallthru
      _
    // Predicated region
    $region14: #{tpu_custom_call.1} parent=1 // pred_check
      _
    $region15: #{tpu_custom_call.1} parent=1 // pred_check_branch
      %76 = sbr.rel (0) target = $region17
    $region16: #{tpu_custom_call.1} parent=1 // pred_region
      _
    $region17: #{tpu_custom_call.1} parent=1 // pred_fallthru
      _
    // Predicated region
    $region18: #{tpu_custom_call.1} parent=1 // pred_check
      _
    $region19: #{tpu_custom_call.1} parent=1 // pred_check_branch
      %78 = sbr.rel (0) target = $region21
    $region20: #{tpu_custom_call.1} parent=1 // pred_region
      _
    $region21: #{tpu_custom_call.1} parent=1 // pred_fallthru
      _
    // Predicated region
    $region22: #{tpu_custom_call.1} parent=1 // pred_check
      _
    $region23: #{tpu_custom_call.1} parent=1 // pred_check_branch
      %80 = sbr.rel (0) target = $region25
    $region24: #{tpu_custom_call.1} parent=1 // pred_region
      _
    $region25: #{tpu_custom_call.1} parent=1 // pred_fallthru
      _
    // Predicated region
    $region26: #{tpu_custom_call.1} parent=1 // pred_check
      _
    $region27: #{tpu_custom_call.1} parent=1 // pred_check_branch
      %82 = sbr.rel (0) target = $region29
    $region28: #{tpu_custom_call.1} parent=1 // pred_region
      _
    $region29: #{tpu_custom_call.1} parent=1 // pred_fallthru
      _
    // Predicated region
    $region30: #{tpu_custom_call.1} parent=1 // pred_check
      _
    $region31: #{tpu_custom_call.1} parent=1 // pred_check_branch
      %84 = sbr.rel (0) target = $region33
    $region32: #{tpu_custom_call.1} parent=1 // pred_region
      _
    $region33: #{tpu_custom_call.1} parent=1 // pred_fallthru
      _
    // Predicated region
    $region34: #{tpu_custom_call.1} parent=1 // pred_check
      _
    $region35: #{tpu_custom_call.1} parent=1 // pred_check_branch
      %86 = sbr.rel (0) target = $region37
    $region36: #{tpu_custom_call.1} parent=1 // pred_region
      _
    $region37: #{tpu_custom_call.1} parent=1 // pred_fallthru
      _
    // Predicated region
    $region38: #{tpu_custom_call.1} parent=1 // pred_check
      _
    $region39: #{tpu_custom_call.1} parent=1 // pred_check_branch
      %88 = sbr.rel (0) target = $region41
    $region40: #{tpu_custom_call.1} parent=1 // pred_region
      _
    $region41: #{tpu_custom_call.1} parent=1 // pred_fallthru
      _
    // Predicated region
    $region42: #{tpu_custom_call.1} parent=1 // pred_check
      _
    $region43: #{tpu_custom_call.1} parent=1 // pred_check_branch
      %90 = sbr.rel (0) target = $region45
    $region44: #{tpu_custom_call.1} parent=1 // pred_region
      _
    $region45: #{tpu_custom_call.1} parent=1 // pred_fallthru
      _
    // Predicated region
    $region46: #{tpu_custom_call.1} parent=1 // pred_check
      _
    $region47: #{tpu_custom_call.1} parent=1 // pred_check_branch
      %92 = sbr.rel (0) target = $region49
    $region48: #{tpu_custom_call.1} parent=1 // pred_region
      _
    $region49: #{tpu_custom_call.1} parent=1 // pred_fallthru
      _
    // Predicated region
    $region50: #{tpu_custom_call.1} parent=1 // pred_check
      _
    $region51: #{tpu_custom_call.1} parent=1 // pred_check_branch
      %94 = sbr.rel (0) target = $region53
    $region52: #{tpu_custom_call.1} parent=1 // pred_region
      _
    $region53: #{tpu_custom_call.1} parent=1 // pred_fallthru
      _
    // Predicated region
    $region54: #{tpu_custom_call.1} parent=1 // pred_check
      _
    $region55: #{tpu_custom_call.1} parent=1 // pred_check_branch
      %96 = sbr.rel (0) target = $region57
    $region56: #{tpu_custom_call.1} parent=1 // pred_region
      _
    $region57: #{tpu_custom_call.1} parent=1 // pred_fallthru
      _
    // Predicated region
    $region58: #{tpu_custom_call.1} parent=1 // pred_check
      _
    $region59: #{tpu_custom_call.1} parent=1 // pred_check_branch
      %98 = sbr.rel (0) target = $region61
    $region60: #{tpu_custom_call.1} parent=1 // pred_region
      _
    $region61: #{tpu_custom_call.1} parent=1 // pred_fallthru
      _
    // Predicated region
    $region62: #{tpu_custom_call.1} parent=1 // pred_check
      _
    $region63: #{tpu_custom_call.1} parent=1 // pred_check_branch
      %100 = sbr.rel (0) target = $region65
    $region64: #{tpu_custom_call.1} parent=1 // pred_region
      _
    $region65: #{tpu_custom_call.1} parent=1 // pred_fallthru
      _
    // Predicated region
    $region66: #{tpu_custom_call.1} parent=1 // pred_check
      _
    $region67: #{tpu_custom_call.1} parent=1 // pred_check_branch
      %102 = sbr.rel (0) target = $region69
    $region68: #{tpu_custom_call.1} parent=1 // pred_region
      _
    $region69: #{tpu_custom_call.1} parent=1 // pred_fallthru
      _
    // Predicated region
    $region70: #{tpu_custom_call.1} parent=1 // pred_check
      _
    $region71: #{tpu_custom_call.1} parent=1 // pred_check_branch
      %104 = sbr.rel (0) target = $region73
    $region72: #{tpu_custom_call.1} parent=1 // pred_region
      _
    $region73: #{tpu_custom_call.1} parent=1 // pred_fallthru
      _
    // Predicated region
    $region74: #{tpu_custom_call.1} parent=1 // pred_check
      _
    $region75: #{tpu_custom_call.1} parent=1 // pred_check_branch
      %106 = sbr.rel (0) target = $region77
    $region76: #{tpu_custom_call.1} parent=1 // pred_region
      _
    $region77: #{tpu_custom_call.1} parent=1 // pred_fallthru
      _
    // Predicated region
    $region78: #{tpu_custom_call.1} parent=1 // pred_check
      _
    $region79: #{tpu_custom_call.1} parent=1 // pred_check_branch
      %108 = sbr.rel (0) target = $region81
    $region80: #{tpu_custom_call.1} parent=1 // pred_region
      _
    $region81: #{tpu_custom_call.1} parent=1 // pred_fallthru
      _
    // Predicated region
    $region82: #{tpu_custom_call.1} parent=1 // pred_check
      _
    $region83: #{tpu_custom_call.1} parent=1 // pred_check_branch
      %110 = sbr.rel (0) target = $region85
    $region84: #{tpu_custom_call.1} parent=1 // pred_region
      _
    $region85: #{tpu_custom_call.1} parent=1 // pred_fallthru
      _
    // Predicated region
    $region86: #{tpu_custom_call.1} parent=1 // pred_check
      _
    $region87: #{tpu_custom_call.1} parent=1 // pred_check_branch
      %112 = sbr.rel (0) target = $region89
    $region88: #{tpu_custom_call.1} parent=1 // pred_region
      _
    $region89: #{tpu_custom_call.1} parent=1 // pred_fallthru
      _
    // Predicated region
    $region90: #{tpu_custom_call.1} parent=1 // pred_check
      _
    $region91: #{tpu_custom_call.1} parent=1 // pred_check_branch
      %114 = sbr.rel (0) target = $region93
    $region92: #{tpu_custom_call.1} parent=1 // pred_region
      _
    $region93: #{tpu_custom_call.1} parent=1 // pred_fallthru
      _
    // Predicated region
    $region94: #{tpu_custom_call.1} parent=1 // pred_check
      _
    $region95: #{tpu_custom_call.1} parent=1 // pred_check_branch
      %116 = sbr.rel (0) target = $region97
    $region96: #{tpu_custom_call.1} parent=1 // pred_region
      _
    $region97: #{tpu_custom_call.1} parent=1 // pred_fallthru
      _
    // Predicated region
    $region98: #{tpu_custom_call.1} parent=1 // pred_check
      _
    $region99: #{tpu_custom_call.1} parent=1 // pred_check_branch
      %118 = sbr.rel (0) target = $region101
    $region100: #{tpu_custom_call.1} parent=1 // pred_region
      _
    $region101: #{tpu_custom_call.1} parent=1 // pred_fallthru
      _
    // Predicated region
    $region102: #{tpu_custom_call.1} parent=1 // pred_check
      _
    $region103: #{tpu_custom_call.1} parent=1 // pred_check_branch
      %120 = sbr.rel (0) target = $region105
    $region104: #{tpu_custom_call.1} parent=1 // pred_region
      _
    $region105: #{tpu_custom_call.1} parent=1 // pred_fallthru
      _
    // Predicated region
    $region106: #{tpu_custom_call.1} parent=1 // pred_check
      _
    $region107: #{tpu_custom_call.1} parent=1 // pred_check_branch
      %122 = sbr.rel (0) target = $region109
    $region108: #{tpu_custom_call.1} parent=1 // pred_region
      _
    $region109: #{tpu_custom_call.1} parent=1 // pred_fallthru
      _
    // Predicated region
    $region110: #{tpu_custom_call.1} parent=1 // pred_check
      _
    $region111: #{tpu_custom_call.1} parent=1 // pred_check_branch
      %124 = sbr.rel (0) target = $region113
    $region112: #{tpu_custom_call.1} parent=1 // pred_region
      _
    $region113: #{tpu_custom_call.1} parent=1 // pred_fallthru
      _
    // Predicated region
    $region114: #{tpu_custom_call.1} parent=1 // pred_check
      _
    $region115: #{tpu_custom_call.1} parent=1 // pred_check_branch
      %126 = sbr.rel (0) target = $region117
    $region116: #{tpu_custom_call.1} parent=1 // pred_region
      _
    $region117: #{tpu_custom_call.1} parent=1 // pred_fallthru
      _
    // Predicated region
    $region118: #{tpu_custom_call.1} parent=1 // pred_check
      _
    $region119: #{tpu_custom_call.1} parent=1 // pred_check_branch
      %128 = sbr.rel (0) target = $region121
    $region120: #{tpu_custom_call.1} parent=1 // pred_region
      _
    $region121: #{tpu_custom_call.1} parent=1 // pred_fallthru
      _
    %v130 = vld [vmem:[%s3] sm:$0xff]
    %v131 = vld [vmem:[%s3 + $0x8] sm:$0xff]
    %v132 = vld [vmem:[%s3 + $0x10] sm:$0xf]
    %v133 = vld [vmem:[%s11] sm:$0x1]
    %v135 = vlaneseq
    %v136 = vshrl.u32 %v135, 7
    %v137 = vsub.s32 0, %v136
    %v138 = vrot.slane %v133, %v137
    %v140 = vmul.f32 %v130, %v138
    %v141 = vmul.f32 %v131, %v138
    %v142 = vmul.f32 %v132, %v138
    %v143 = vadd.f32 %v130, 0.0001
    %v144 = vadd.f32 %v131, 0.0001
    %v145 = vadd.f32 %v132, 0.0001
    %v146 = vrcp.pop %v143
    %v147 = vrcp.pop %v144
    %v148 = vrcp.pop %v145
    %v149 = vmul.f32 %v140, %v146
    %v150 = vmul.f32 %v141, %v147
    %v151 = vmul.f32 %v142, %v148
    %v152 = vld [vmem:[%s1] sm:$0xff]
    %v153 = vld [vmem:[%s1 + $0x8] sm:$0xf]
    %v154 = vld [vmem:[%s9] sm:$0x1]
    %v156 = vlaneseq
    %v157 = vshrl.u32 %v156, 7
    %v158 = vsub.s32 0, %v157
    %v159 = vrot.slane %v154, %v158
    %v161 = vrcp.pop %v159
    %v162 = vmul.f32 %v152, %v161
    %v163 = vmul.f32 %v153, %v161
    %v164 = vlaneseq
    %v165 = vand.u32 %v164, 127
    %v166 = vld [vmem:[%s5] sm:$0xff]
    %v167 = vld [vmem:[%s5 + $0x8] sm:$0xff]
    %v168 = vld [vmem:[%s5 + $0x10] sm:$0xf]
    %169 = vset.pattern.permute.xlu0 0
    %170 = vperm.xlu0 %169, %v166
    %v171 = vpop.permute.xlu0 %170
    %172 = vset.pattern.permute.xlu0 0
    %173 = vperm.xlu0 %172, %v167
    %v174 = vpop.permute.xlu0 %173
    %175 = vset.pattern.permute.xlu0 0
    %176 = vperm.xlu0 %175, %v168
    %v177 = vpop.permute.xlu0 %176
    %vm178 = vcmp.eq.s32.totalorder %v171, %v165
    %vm179 = vcmp.eq.s32.totalorder %v174, %v165
    %vm180 = vcmp.eq.s32.totalorder %v177, %v165
    %v181 = vsel %vm178, 1, 0
    %v182 = vsel %vm179, 1, 0
    %v183 = vsel %vm180, 1, 0
    %v184 = vcvt.s32.f32 %v181
    %v185 = vcvt.s32.f32 %v182
    %v186 = vcvt.s32.f32 %v183
    %v187 = vpack.c.bf16 %v185, %v184
    %v188 = vpack.c.bf16 %v186, %v186
    %v189 = vld [vmem:[%s7] sm:$0xff]
    %v190 = vld [vmem:[%s7 + $0x8] sm:$0xff]
    %v191 = vld [vmem:[%s7 + $0x10] sm:$0xf]
    %192 = vset.pattern.permute.xlu0 0
    %193 = vperm.xlu0 %192, %v189
    %v194 = vpop.permute.xlu0 %193
    %195 = vset.pattern.permute.xlu0 0
    %196 = vperm.xlu0 %195, %v190
    %v197 = vpop.permute.xlu0 %196
    %198 = vset.pattern.permute.xlu0 0
    %199 = vperm.xlu0 %198, %v191
    %v200 = vpop.permute.xlu0 %199
    %vm201 = vcmp.eq.s32.totalorder %v194, %v165
    %vm202 = vcmp.eq.s32.totalorder %v197, %v165
    %vm203 = vcmp.eq.s32.totalorder %v200, %v165
    %v204 = vsel %vm201, 1, 0
    %v205 = vsel %vm202, 1, 0
    %v206 = vsel %vm203, 1, 0
    %v207 = vcvt.s32.f32 %v204
    %v208 = vcvt.s32.f32 %v205
    %v209 = vcvt.s32.f32 %v206
    %v210 = vpack.c.bf16 %v208, %v207
    %v211 = vpack.c.bf16 %v209, %v209
    %v212 = vld [vmem:[%s21] sm:$0xff]
    %v213 = vld [vmem:[%s21 + $0x8] sm:$0xf]
    %v214 = vpack.c.bf16 %v150, %v149
    %v215 = vpack.c.bf16 %v151, %v151
    %v216 = vpack.c.bf16 %v213, %v212
    %v217 = vld [vmem:[%s23] sm:$0x1]
    %v219 = vlaneseq
    %v220 = vshrl.u32 %v219, 7
    %v221 = vsub.s32 0, %v220
    %v222 = vrot.slane %v217, %v221
    %vm224 = vcmask 97280
    %v226 = vsel %vm224, %v214, 0
    %v229 = vsel %vm224, %v215, 0
    %vm231 = vcmask 1045504
    %v233 = vsel %vm231, %v216, 0
    %235 = vmatprep.subr.bf16.mxu0 0
    %236 = vmatpush1.bf16.msra.mxu0 %v233
    %237 = vmatprep.subr.bf16.mxu0 0
    %238 = vmatpush1.bf16.msra.mxu0 0
    %239 = vmatprep.subr.bf16.mxu0 0
    %240 = vmatpush1.bf16.msra.mxu0 0
    %241 = vmatprep.subr.bf16.mxu0 0
    %242 = vmatpush1.bf16.msra.mxu0 0
    %243 = vmatprep.subr.bf16.mxu0 0
    %244 = vmatpush1.bf16.msra.mxu0 0
    %245 = vmatprep.subr.bf16.mxu0 0
    %246 = vmatpush1.bf16.msra.mxu0 0
    %247 = vmatprep.subr.bf16.mxu0 0
    %248 = vmatpush1.bf16.msra.mxu0 0
    %249 = vmatprep.subr.bf16.mxu0 0
    %250 = vmatpush1.bf16.msra.mxu0 0
    %251 = vmatprep.subr.bf16.mxu0 0
    %252 = vmatpush1.bf16.msra.mxu0 0
    %253 = vmatprep.subr.bf16.mxu0 0
    %254 = vmatpush1.bf16.msra.mxu0 0
    %255 = vmatprep.subr.bf16.mxu0 0
    %256 = vmatpush1.bf16.msra.mxu0 0
    %257 = vmatprep.subr.bf16.mxu0 0
    %258 = vmatpush1.bf16.msra.mxu0 0
    %259 = vmatprep.subr.bf16.mxu0 0
    %260 = vmatpush1.bf16.msra.mxu0 0
    %261 = vmatprep.subr.bf16.mxu0 0
    %262 = vmatpush1.bf16.msra.mxu0 0
    %263 = vmatprep.subr.bf16.mxu0 0
    %264 = vmatpush1.bf16.msra.mxu0 0
    %265 = vmatprep.subr.bf16.mxu0 0
    %266 = vmatpush1.bf16.msra.mxu0 0
    %267 = vmatprep.mubr.bf16.mxu0 0
    %268 = vmatmul.mubr.bf16.gmra.mrb[0].mxu0 %v226
    %v269 = vpop.f32.mrb[0].mxu0
    %v270 = vadd.f32 %v222, %v269
    %v271 = vpop.f32.mrb[0].mxu0
    %v272 = vpop.f32.mrb[0].mxu0
    %v273 = vadd.f32 %v222, %v272
    %v274 = vpop.f32.mrb[0].mxu0
    %275 = vmatprep.mubr.bf16.mxu0 0
    %276 = vmatmul.mubr.bf16.gmra.mrb[0].mxu0 %v229
    %v277 = vpop.f32.mrb[0].mxu0
    %v278 = vadd.f32 %v222, %v277
    %v279 = vpop.f32.mrb[0].mxu0
    %v280 = vpop.f32.mrb[0].mxu0
    %v281 = vpop.f32.mrb[0].mxu0
    %282 = vdwg.mxu0
    %vm283 = vcmp.ge.f32.partialorder %v270, 0.0
    %vm284 = vcmp.ge.f32.partialorder %v273, 0.0
    %vm285 = vcmp.ge.f32.partialorder %v278, 0.0
    %v286 = vmul.f32 %v270, 0.01
    %v287 = vmul.f32 %v273, 0.01
    %v288 = vmul.f32 %v278, 0.01
    %v289 = vsel %vm283, %v270, %v286
    %v290 = vsel %vm284, %v273, %v287
    %v291 = vsel %vm285, %v278, %v288
    %v292 = vld [vmem:[%s25] sm:$0xff]
    %v293 = vld [vmem:[%s25 + $0x8] sm:$0xff]
    %v294 = vpack.c.bf16 %v290, %v289
    %v295 = vpack.c.bf16 %v291, %v291
    %v296 = vpack.c.bf16 %v293, %v292
    %v297 = vld [vmem:[%s27] sm:$0x1]
    %v299 = vlaneseq
    %v300 = vshrl.u32 %v299, 7
    %v301 = vsub.s32 0, %v300
    %v302 = vrot.slane %v297, %v301
    %vm304 = vcmask 130048
    %v306 = vsel %vm304, %v294, 0
    %v309 = vsel %vm304, %v295, 0
    %311 = vmatprep.subr.bf16.mxu0 0
    %312 = vmatpush1.bf16.msra.mxu0 %v296
    %313 = vmatprep.subr.bf16.mxu0 0
    %314 = vmatpush1.bf16.msra.mxu0 0
    %315 = vmatprep.subr.bf16.mxu0 0
    %316 = vmatpush1.bf16.msra.mxu0 0
    %317 = vmatprep.subr.bf16.mxu0 0
    %318 = vmatpush1.bf16.msra.mxu0 0
    %319 = vmatprep.subr.bf16.mxu0 0
    %320 = vmatpush1.bf16.msra.mxu0 0
    %321 = vmatprep.subr.bf16.mxu0 0
    %322 = vmatpush1.bf16.msra.mxu0 0
    %323 = vmatprep.subr.bf16.mxu0 0
    %324 = vmatpush1.bf16.msra.mxu0 0
    %325 = vmatprep.subr.bf16.mxu0 0
    %326 = vmatpush1.bf16.msra.mxu0 0
    %327 = vmatprep.subr.bf16.mxu0 0
    %328 = vmatpush1.bf16.msra.mxu0 0
    %329 = vmatprep.subr.bf16.mxu0 0
    %330 = vmatpush1.bf16.msra.mxu0 0
    %331 = vmatprep.subr.bf16.mxu0 0
    %332 = vmatpush1.bf16.msra.mxu0 0
    %333 = vmatprep.subr.bf16.mxu0 0
    %334 = vmatpush1.bf16.msra.mxu0 0
    %335 = vmatprep.subr.bf16.mxu0 0
    %336 = vmatpush1.bf16.msra.mxu0 0
    %337 = vmatprep.subr.bf16.mxu0 0
    %338 = vmatpush1.bf16.msra.mxu0 0
    %339 = vmatprep.subr.bf16.mxu0 0
    %340 = vmatpush1.bf16.msra.mxu0 0
    %341 = vmatprep.subr.bf16.mxu0 0
    %342 = vmatpush1.bf16.msra.mxu0 0
    %343 = vmatprep.mubr.bf16.mxu0 0
    %344 = vmatmul.mubr.bf16.gmra.mrb[0].mxu0 %v306
    %v345 = vpop.f32.mrb[0].mxu0
    %v346 = vadd.f32 %v302, %v345
    %v347 = vpop.f32.mrb[0].mxu0
    %v348 = vpop.f32.mrb[0].mxu0
    %v349 = vadd.f32 %v302, %v348
    %v350 = vpop.f32.mrb[0].mxu0
    %351 = vmatprep.mubr.bf16.mxu0 0
    %352 = vmatmul.mubr.bf16.gmra.mrb[0].mxu0 %v309
    %v353 = vpop.f32.mrb[0].mxu0
    %v354 = vadd.f32 %v302, %v353
    %v355 = vpop.f32.mrb[0].mxu0
    %v356 = vpop.f32.mrb[0].mxu0
    %v357 = vpop.f32.mrb[0].mxu0
    %358 = vdwg.mxu0
    %vm359 = vcmp.ge.f32.partialorder %v346, 0.0
    %vm360 = vcmp.ge.f32.partialorder %v349, 0.0
    %vm361 = vcmp.ge.f32.partialorder %v354, 0.0
    %v362 = vmul.f32 %v346, 0.01
    %v363 = vmul.f32 %v349, 0.01
    %v364 = vmul.f32 %v354, 0.01
    %v365 = vsel %vm359, %v346, %v362
    %v366 = vsel %vm360, %v349, %v363
    %v367 = vsel %vm361, %v354, %v364
    %v368 = vld [vmem:[%s29] sm:$0xff]
    %v369 = vld [vmem:[%s29 + $0x8] sm:$0xff]
    %v370 = vpack.c.bf16 %v366, %v365
    %v371 = vpack.c.bf16 %v367, %v367
    %v372 = vpack.c.bf16 %v369, %v368
    %v373 = vld [vmem:[%s31] sm:$0x1]
    %v375 = vlaneseq
    %v376 = vshrl.u32 %v375, 7
    %v377 = vsub.s32 0, %v376
    %v378 = vrot.slane %v373, %v377
    %v381 = vsel %vm304, %v370, 0
    %v384 = vsel %vm304, %v371, 0
    %386 = vmatprep.subr.bf16.mxu0 0
    %387 = vmatpush1.bf16.msra.mxu0 %v372
    %388 = vmatprep.subr.bf16.mxu0 0
    %389 = vmatpush1.bf16.msra.mxu0 0
    %390 = vmatprep.subr.bf16.mxu0 0
    %391 = vmatpush1.bf16.msra.mxu0 0
    %392 = vmatprep.subr.bf16.mxu0 0
    %393 = vmatpush1.bf16.msra.mxu0 0
    %394 = vmatprep.subr.bf16.mxu0 0
    %395 = vmatpush1.bf16.msra.mxu0 0
    %396 = vmatprep.subr.bf16.mxu0 0
    %397 = vmatpush1.bf16.msra.mxu0 0
    %398 = vmatprep.subr.bf16.mxu0 0
    %399 = vmatpush1.bf16.msra.mxu0 0
    %400 = vmatprep.subr.bf16.mxu0 0
    %401 = vmatpush1.bf16.msra.mxu0 0
    %402 = vmatprep.subr.bf16.mxu0 0
    %403 = vmatpush1.bf16.msra.mxu0 0
    %404 = vmatprep.subr.bf16.mxu0 0
    %405 = vmatpush1.bf16.msra.mxu0 0
    %406 = vmatprep.subr.bf16.mxu0 0
    %407 = vmatpush1.bf16.msra.mxu0 0
    %408 = vmatprep.subr.bf16.mxu0 0
    %409 = vmatpush1.bf16.msra.mxu0 0
    %410 = vmatprep.subr.bf16.mxu0 0
    %411 = vmatpush1.bf16.msra.mxu0 0
    %412 = vmatprep.subr.bf16.mxu0 0
    %413 = vmatpush1.bf16.msra.mxu0 0
    %414 = vmatprep.subr.bf16.mxu0 0
    %415 = vmatpush1.bf16.msra.mxu0 0
    %416 = vmatprep.subr.bf16.mxu0 0
    %417 = vmatpush1.bf16.msra.mxu0 0
    %418 = vmatprep.mubr.bf16.mxu0 0
    %419 = vmatmul.mubr.bf16.gmra.mrb[0].mxu0 %v381
    %v420 = vpop.f32.mrb[0].mxu0
    %v421 = vadd.f32 %v378, %v420
    %v422 = vpop.f32.mrb[0].mxu0
    %v423 = vpop.f32.mrb[0].mxu0
    %v424 = vadd.f32 %v378, %v423
    %v425 = vpop.f32.mrb[0].mxu0
    %426 = vmatprep.mubr.bf16.mxu0 0
    %427 = vmatmul.mubr.bf16.gmra.mrb[0].mxu0 %v384
    %v428 = vpop.f32.mrb[0].mxu0
    %v429 = vadd.f32 %v378, %v428
    %v430 = vpop.f32.mrb[0].mxu0
    %v431 = vpop.f32.mrb[0].mxu0
    %v432 = vpop.f32.mrb[0].mxu0
    %433 = vdwg.mxu0
    %vm434 = vcmp.ge.f32.partialorder %v421, 0.0
    %vm435 = vcmp.ge.f32.partialorder %v424, 0.0
    %vm436 = vcmp.ge.f32.partialorder %v429, 0.0
    %v437 = vmul.f32 %v421, 0.01
    %v438 = vmul.f32 %v424, 0.01
    %v439 = vmul.f32 %v429, 0.01
    %v440 = vsel %vm434, %v421, %v437
    %v441 = vsel %vm435, %v424, %v438
    %v442 = vsel %vm436, %v429, %v439
    %v443 = vld [vmem:[%s33] sm:$0xff]
    %v444 = vld [vmem:[%s33 + $0x8] sm:$0xff]
    %v445 = vld [vmem:[%s33 + $0x10] sm:$0xff]
    %v446 = vld [vmem:[%s33 + $0x18] sm:$0xff]
    %v447 = vpack.c.bf16 %v441, %v440
    %v448 = vpack.c.bf16 %v442, %v442
    %v449 = vpack.c.bf16 %v444, %v443
    %v450 = vpack.c.bf16 %v446, %v445
    %v451 = vld [vmem:[%s35] sm:$0x1]
    %v453 = vlaneseq
    %v454 = vshrl.u32 %v453, 7
    %v455 = vsub.s32 0, %v454
    %v456 = vrot.slane %v451, %v455
    %vm458 = vcmask 261120
    %v460 = vsel %vm458, %v447, 0
    %v463 = vsel %vm458, %v448, 0
    %465 = vmatprep.subr.bf16.mxu0 0
    %466 = vmatpush1.bf16.msra.mxu0 %v449
    %467 = vmatprep.subr.bf16.mxu0 0
    %468 = vmatpush1.bf16.msra.mxu0 %v450
    %469 = vmatprep.subr.bf16.mxu0 0
    %470 = vmatpush1.bf16.msra.mxu0 0
    %471 = vmatprep.subr.bf16.mxu0 0
    %472 = vmatpush1.bf16.msra.mxu0 0
    %473 = vmatprep.subr.bf16.mxu0 0
    %474 = vmatpush1.bf16.msra.mxu0 0
    %475 = vmatprep.subr.bf16.mxu0 0
    %476 = vmatpush1.bf16.msra.mxu0 0
    %477 = vmatprep.subr.bf16.mxu0 0
    %478 = vmatpush1.bf16.msra.mxu0 0
    %479 = vmatprep.subr.bf16.mxu0 0
    %480 = vmatpush1.bf16.msra.mxu0 0
    %481 = vmatprep.subr.bf16.mxu0 0
    %482 = vmatpush1.bf16.msra.mxu0 0
    %483 = vmatprep.subr.bf16.mxu0 0
    %484 = vmatpush1.bf16.msra.mxu0 0
    %485 = vmatprep.subr.bf16.mxu0 0
    %486 = vmatpush1.bf16.msra.mxu0 0
    %487 = vmatprep.subr.bf16.mxu0 0
    %488 = vmatpush1.bf16.msra.mxu0 0
    %489 = vmatprep.subr.bf16.mxu0 0
    %490 = vmatpush1.bf16.msra.mxu0 0
    %491 = vmatprep.subr.bf16.mxu0 0
    %492 = vmatpush1.bf16.msra.mxu0 0
    %493 = vmatprep.subr.bf16.mxu0 0
    %494 = vmatpush1.bf16.msra.mxu0 0
    %495 = vmatprep.subr.bf16.mxu0 0
    %496 = vmatpush1.bf16.msra.mxu0 0
    %497 = vmatprep.mubr.bf16.mxu0 0
    %498 = vmatmul.mubr.bf16.gmra.mrb[0].mxu0 %v460
    %v499 = vpop.f32.mrb[0].mxu0
    %v500 = vadd.f32 %v456, %v499
    %v501 = vpop.f32.mrb[0].mxu0
    %v502 = vpop.f32.mrb[0].mxu0
    %v503 = vadd.f32 %v456, %v502
    %v504 = vpop.f32.mrb[0].mxu0
    %505 = vmatprep.mubr.bf16.mxu0 0
    %506 = vmatmul.mubr.bf16.gmra.mrb[0].mxu0 %v463
    %v507 = vpop.f32.mrb[0].mxu0
    %v508 = vadd.f32 %v456, %v507
    %v509 = vpop.f32.mrb[0].mxu0
    %v510 = vpop.f32.mrb[0].mxu0
    %v511 = vpop.f32.mrb[0].mxu0
    %512 = vdwg.mxu0
    %v513 = vxor.u32 %v500, 2147483648
    %v514 = vxor.u32 %v503, 2147483648
    %v515 = vxor.u32 %v508, 2147483648
    %v516 = vmul.f32 %v513, 1.442695
    %v517 = vpow.pop %v516
    %v518 = vmul.f32 %v514, 1.442695
    %v519 = vpow.pop %v518
    %v520 = vmul.f32 %v515, 1.442695
    %v521 = vpow.pop %v520
    %v522 = vadd.f32 %v517, 1.0
    %v523 = vadd.f32 %v519, 1.0
    %v524 = vadd.f32 %v521, 1.0
    %v525 = vrcp.pop %v522
    %v526 = vmul.f32 1.0, %v525
    %v527 = vrcp.pop %v523
    %v528 = vmul.f32 1.0, %v527
    %v529 = vrcp.pop %v524
    %v530 = vmul.f32 1.0, %v529
    %v531 = vld [vmem:[%s13] sm:$0xff]
    %v532 = vld [vmem:[%s13 + $0x8] sm:$0xff]
    %v533 = vld [vmem:[%s13 + $0x10] sm:$0x7]
    %v534 = vpack.c.bf16 %v163, %v162
    %v535 = vpack.c.bf16 %v532, %v531
    %v536 = vpack.c.bf16 %v533, %v533
    %v537 = vld [vmem:[%s15] sm:$0x1]
    %v539 = vlaneseq
    %v540 = vshrl.u32 %v539, 7
    %v541 = vsub.s32 0, %v540
    %v542 = vrot.slane %v537, %v541
    %vm544 = vcmask 154624
    %v546 = vsel %vm544, %v534, 0
    %vm548 = vcmask 1040384
    %vm549 = vcmask 1041408
    %v550 = vsel %vm548, 4294967295, 65535
    %v551 = vsel %vm549, %v550, 0
    %v553 = vand.u32 %v536, %v551
    %555 = vmatprep.subr.bf16.mxu0 0
    %556 = vmatpush1.bf16.msra.mxu0 %v535
    %557 = vmatprep.subr.bf16.mxu0 0
    %558 = vmatpush1.bf16.msra.mxu0 %v553
    %559 = vmatprep.subr.bf16.mxu0 0
    %560 = vmatpush1.bf16.msra.mxu0 0
    %561 = vmatprep.subr.bf16.mxu0 0
    %562 = vmatpush1.bf16.msra.mxu0 0
    %563 = vmatprep.subr.bf16.mxu0 0
    %564 = vmatpush1.bf16.msra.mxu0 0
    %565 = vmatprep.subr.bf16.mxu0 0
    %566 = vmatpush1.bf16.msra.mxu0 0
    %567 = vmatprep.subr.bf16.mxu0 0
    %568 = vmatpush1.bf16.msra.mxu0 0
    %569 = vmatprep.subr.bf16.mxu0 0
    %570 = vmatpush1.bf16.msra.mxu0 0
    %571 = vmatprep.subr.bf16.mxu0 0
    %572 = vmatpush1.bf16.msra.mxu0 0
    %573 = vmatprep.subr.bf16.mxu0 0
    %574 = vmatpush1.bf16.msra.mxu0 0
    %575 = vmatprep.subr.bf16.mxu0 0
    %576 = vmatpush1.bf16.msra.mxu0 0
    %577 = vmatprep.subr.bf16.mxu0 0
    %578 = vmatpush1.bf16.msra.mxu0 0
    %579 = vmatprep.subr.bf16.mxu0 0
    %580 = vmatpush1.bf16.msra.mxu0 0
    %581 = vmatprep.subr.bf16.mxu0 0
    %582 = vmatpush1.bf16.msra.mxu0 0
    %583 = vmatprep.subr.bf16.mxu0 0
    %584 = vmatpush1.bf16.msra.mxu0 0
    %585 = vmatprep.subr.bf16.mxu0 0
    %586 = vmatpush1.bf16.msra.mxu0 0
    %587 = vmatprep.mubr.bf16.mxu0 0
    %588 = vmatmul.mubr.bf16.gmra.mrb[0].mxu0 %v546
    %v589 = vpop.f32.mrb[0].mxu0
    %v590 = vadd.f32 %v542, %v589
    %v591 = vpop.f32.mrb[0].mxu0
    %v592 = vpop.f32.mrb[0].mxu0
    %v593 = vadd.f32 %v542, %v592
    %v594 = vpop.f32.mrb[0].mxu0
    %595 = vdwg.mxu0
    %vm596 = vcmp.ge.f32.partialorder %v590, 0.0
    %vm597 = vcmp.ge.f32.partialorder %v593, 0.0
    %v598 = vmul.f32 %v590, 0.01
    %v599 = vmul.f32 %v593, 0.01
    %v600 = vsel %vm596, %v590, %v598
    %v601 = vsel %vm597, %v593, %v599
    %v602 = vld [vmem:[%s17] sm:$0xff]
    %v603 = vld [vmem:[%s17 + $0x8] sm:$0xff]
    %v604 = vpack.c.bf16 %v601, %v600
    %v605 = vpack.c.bf16 %v603, %v602
    %v606 = vld [vmem:[%s19] sm:$0x1]
    %v608 = vlaneseq
    %v609 = vshrl.u32 %v608, 7
    %v610 = vsub.s32 0, %v609
    %v611 = vrot.slane %v606, %v610
    %v614 = vsel %vm304, %v604, 0
    %616 = vmatprep.subr.bf16.mxu0 0
    %617 = vmatpush1.bf16.msra.mxu0 %v605
    %618 = vmatprep.subr.bf16.mxu0 0
    %619 = vmatpush1.bf16.msra.mxu0 0
    %620 = vmatprep.subr.bf16.mxu0 0
    %621 = vmatpush1.bf16.msra.mxu0 0
    %622 = vmatprep.subr.bf16.mxu0 0
    %623 = vmatpush1.bf16.msra.mxu0 0
    %624 = vmatprep.subr.bf16.mxu0 0
    %625 = vmatpush1.bf16.msra.mxu0 0
    %626 = vmatprep.subr.bf16.mxu0 0
    %627 = vmatpush1.bf16.msra.mxu0 0
    %628 = vmatprep.subr.bf16.mxu0 0
    %629 = vmatpush1.bf16.msra.mxu0 0
    %630 = vmatprep.subr.bf16.mxu0 0
    %631 = vmatpush1.bf16.msra.mxu0 0
    %632 = vmatprep.subr.bf16.mxu0 0
    %633 = vmatpush1.bf16.msra.mxu0 0
    %634 = vmatprep.subr.bf16.mxu0 0
    %635 = vmatpush1.bf16.msra.mxu0 0
    %636 = vmatprep.subr.bf16.mxu0 0
    %637 = vmatpush1.bf16.msra.mxu0 0
    %638 = vmatprep.subr.bf16.mxu0 0
    %639 = vmatpush1.bf16.msra.mxu0 0
    %640 = vmatprep.subr.bf16.mxu0 0
    %641 = vmatpush1.bf16.msra.mxu0 0
    %642 = vmatprep.subr.bf16.mxu0 0
    %643 = vmatpush1.bf16.msra.mxu0 0
    %644 = vmatprep.subr.bf16.mxu0 0
    %645 = vmatpush1.bf16.msra.mxu0 0
    %646 = vmatprep.subr.bf16.mxu0 0
    %647 = vmatpush1.bf16.msra.mxu0 0
    %648 = vmatprep.mubr.bf16.mxu0 0
    %649 = vmatmul.mubr.bf16.gmra.mrb[0].mxu0 %v614
    %v650 = vpop.f32.mrb[0].mxu0
    %v651 = vadd.f32 %v611, %v650
    %v652 = vpop.f32.mrb[0].mxu0
    %v653 = vpop.f32.mrb[0].mxu0
    %v654 = vadd.f32 %v611, %v653
    %v655 = vpop.f32.mrb[0].mxu0
    %656 = vdwg.mxu0
    %vm657 = vcmp.ge.f32.partialorder %v651, 0.0
    %vm658 = vcmp.ge.f32.partialorder %v654, 0.0
    %v659 = vmul.f32 %v651, 0.01
    %v660 = vmul.f32 %v654, 0.01
    %v661 = vsel %vm657, %v651, %v659
    %v662 = vsel %vm658, %v654, %v660
    %v663 = vpack.c.bf16 %v662, %v661
    %v665 = vsel %vm224, %v187, 0
    %v668 = vsel %vm224, %v188, 0
    %v671 = vsel %vm231, %v663, 0
    %673 = vmatprep.subr.bf16.mxu0 0
    %674 = vmatpush1.bf16.msra.mxu0 %v671
    %675 = vmatprep.subr.bf16.mxu0 0
    %676 = vmatpush1.bf16.msra.mxu0 0
    %677 = vmatprep.subr.bf16.mxu0 0
    %678 = vmatpush1.bf16.msra.mxu0 0
    %679 = vmatprep.subr.bf16.mxu0 0
    %680 = vmatpush1.bf16.msra.mxu0 0
    %681 = vmatprep.subr.bf16.mxu0 0
    %682 = vmatpush1.bf16.msra.mxu0 0
    %683 = vmatprep.subr.bf16.mxu0 0
    %684 = vmatpush1.bf16.msra.mxu0 0
    %685 = vmatprep.subr.bf16.mxu0 0
    %686 = vmatpush1.bf16.msra.mxu0 0
    %687 = vmatprep.subr.bf16.mxu0 0
    %688 = vmatpush1.bf16.msra.mxu0 0
    %689 = vmatprep.subr.bf16.mxu0 0
    %690 = vmatpush1.bf16.msra.mxu0 0
    %691 = vmatprep.subr.bf16.mxu0 0
    %692 = vmatpush1.bf16.msra.mxu0 0
    %693 = vmatprep.subr.bf16.mxu0 0
    %694 = vmatpush1.bf16.msra.mxu0 0
    %695 = vmatprep.subr.bf16.mxu0 0
    %696 = vmatpush1.bf16.msra.mxu0 0
    %697 = vmatprep.subr.bf16.mxu0 0
    %698 = vmatpush1.bf16.msra.mxu0 0
    %699 = vmatprep.subr.bf16.mxu0 0
    %700 = vmatpush1.bf16.msra.mxu0 0
    %701 = vmatprep.subr.bf16.mxu0 0
    %702 = vmatpush1.bf16.msra.mxu0 0
    %703 = vmatprep.subr.bf16.mxu0 0
    %704 = vmatpush1.bf16.msra.mxu0 0
    %705 = vmatprep.mubr.bf16.mxu0 0
    %706 = vmatmul.mubr.bf16.gmra.mrb[0].mxu0 %v665
    %v707 = vpop.f32.mrb[0].mxu0
    %v708 = vadd.f32 0.0, %v707
    %v709 = vpop.f32.mrb[0].mxu0
    %v710 = vpop.f32.mrb[0].mxu0
    %v711 = vadd.f32 0.0, %v710
    %v712 = vpop.f32.mrb[0].mxu0
    %713 = vmatprep.mubr.bf16.mxu0 0
    %714 = vmatmul.mubr.bf16.gmra.mrb[0].mxu0 %v668
    %v715 = vpop.f32.mrb[0].mxu0
    %v716 = vadd.f32 0.0, %v715
    %v717 = vpop.f32.mrb[0].mxu0
    %v718 = vpop.f32.mrb[0].mxu0
    %v719 = vpop.f32.mrb[0].mxu0
    %720 = vdwg.mxu0
    %v722 = vsel %vm224, %v210, 0
    %v725 = vsel %vm224, %v211, 0
    %727 = vmatprep.subr.bf16.mxu0 0
    %728 = vmatpush1.bf16.msra.mxu0 %v671
    %729 = vmatprep.subr.bf16.mxu0 0
    %730 = vmatpush1.bf16.msra.mxu0 0
    %731 = vmatprep.subr.bf16.mxu0 0
    %732 = vmatpush1.bf16.msra.mxu0 0
    %733 = vmatprep.subr.bf16.mxu0 0
    %734 = vmatpush1.bf16.msra.mxu0 0
    %735 = vmatprep.subr.bf16.mxu0 0
    %736 = vmatpush1.bf16.msra.mxu0 0
    %737 = vmatprep.subr.bf16.mxu0 0
    %738 = vmatpush1.bf16.msra.mxu0 0
    %739 = vmatprep.subr.bf16.mxu0 0
    %740 = vmatpush1.bf16.msra.mxu0 0
    %741 = vmatprep.subr.bf16.mxu0 0
    %742 = vmatpush1.bf16.msra.mxu0 0
    %743 = vmatprep.subr.bf16.mxu0 0
    %744 = vmatpush1.bf16.msra.mxu0 0
    %745 = vmatprep.subr.bf16.mxu0 0
    %746 = vmatpush1.bf16.msra.mxu0 0
    %747 = vmatprep.subr.bf16.mxu0 0
    %748 = vmatpush1.bf16.msra.mxu0 0
    %749 = vmatprep.subr.bf16.mxu0 0
    %750 = vmatpush1.bf16.msra.mxu0 0
    %751 = vmatprep.subr.bf16.mxu0 0
    %752 = vmatpush1.bf16.msra.mxu0 0
    %753 = vmatprep.subr.bf16.mxu0 0
    %754 = vmatpush1.bf16.msra.mxu0 0
    %755 = vmatprep.subr.bf16.mxu0 0
    %756 = vmatpush1.bf16.msra.mxu0 0
    %757 = vmatprep.subr.bf16.mxu0 0
    %758 = vmatpush1.bf16.msra.mxu0 0
    %759 = vmatprep.mubr.bf16.mxu0 0
    %760 = vmatmul.mubr.bf16.gmra.mrb[0].mxu0 %v722
    %v761 = vpop.f32.mrb[0].mxu0
    %v762 = vadd.f32 0.0, %v761
    %v763 = vpop.f32.mrb[0].mxu0
    %v764 = vpop.f32.mrb[0].mxu0
    %v765 = vadd.f32 0.0, %v764
    %v766 = vpop.f32.mrb[0].mxu0
    %767 = vmatprep.mubr.bf16.mxu0 0
    %768 = vmatmul.mubr.bf16.gmra.mrb[0].mxu0 %v725
    %v769 = vpop.f32.mrb[0].mxu0
    %v770 = vadd.f32 0.0, %v769
    %v771 = vpop.f32.mrb[0].mxu0
    %v772 = vpop.f32.mrb[0].mxu0
    %v773 = vpop.f32.mrb[0].mxu0
    %774 = vdwg.mxu0
    %vm778 = vcmask 1043456
    %v779 = vrot.slane %v708, 4
    %v780 = vrot.slane %v711, 4
    %v781 = vsel %vm778, %v779, %v780
    %v782 = vrot.slane %v716, 4
    %v783 = vsel %vm778, %v780, %v782
    %v787 = vsel %vm778, %v662, %v779
    %v788 = vsub.f32 %v762, %v708
    %v789 = vsub.f32 %v765, %v711
    %v790 = vsub.f32 %v770, %v716
    %v791 = vsub.f32 %v708, %v762
    %v792 = vsub.f32 %v711, %v765
    %v793 = vsub.f32 %v716, %v770
    %v797 = vrot.slane %v788, 4
    %v798 = vrot.slane %v789, 4
    %v799 = vsel %vm778, %v797, %v798
    %v800 = vrot.slane %v790, 4
    %v801 = vsel %vm778, %v798, %v800
    %v803 = vsel %vm778, 0.0, %v797
    %809 = vrot.lane.b32.xlu0 0.0, 16
    %v810 = vpop.permute.xlu0 %809
    %811 = vrot.lane.b32.xlu0 %v803, 16
    %v812 = vpop.permute.xlu0 %811
    %813 = vrot.lane.b32.xlu0 %v799, 16
    %v814 = vpop.permute.xlu0 %813
    %815 = vrot.lane.b32.xlu0 %v801, 16
    %v816 = vpop.permute.xlu0 %815
    %817 = vrot.lane.b32.xlu0 %v791, 16
    %v818 = vpop.permute.xlu0 %817
    %819 = vrot.lane.b32.xlu0 %v792, 16
    %v820 = vpop.permute.xlu0 %819
    %821 = vrot.lane.b32.xlu0 %v793, 16
    %v822 = vpop.permute.xlu0 %821
    %v830 = vsel %vm304, %v661, %v810
    %v831 = vsel %vm304, %v787, %v812
    %v832 = vsel %vm304, %v781, %v814
    %v833 = vsel %vm304, %v783, %v816
    %v834 = vsel %vm304, %v762, %v818
    %v835 = vsel %vm304, %v765, %v820
    %v836 = vsel %vm304, %v770, %v822
    %v837 = vld [vmem:[%s37] sm:$0xff]
    %v838 = vld [vmem:[%s37 + $0x8] sm:$0xff]
    %v839 = vld [vmem:[%s37 + $0x10] sm:$0xff]
    %v840 = vld [vmem:[%s37 + $0x18] sm:$0xff]
    %v841 = vpack.c.bf16 %v831, %v830
    %v842 = vpack.c.bf16 %v833, %v832
    %v843 = vpack.c.bf16 %v835, %v834
    %v844 = vpack.c.bf16 %v836, %v836
    %v845 = vpack.c.bf16 %v838, %v837
    %v846 = vpack.c.bf16 %v840, %v839
    %v847 = vld [vmem:[%s39] sm:$0x1]
    %v849 = vlaneseq
    %v850 = vshrl.u32 %v849, 7
    %v851 = vsub.s32 0, %v850
    %v852 = vrot.slane %v847, %v851
    %v855 = vsel %vm458, %v841, 0
    %v858 = vsel %vm458, %v842, 0
    %v861 = vsel %vm458, %v843, 0
    %v864 = vsel %vm458, %v844, 0
    %866 = vmatprep.subr.bf16.mxu0 0
    %867 = vmatpush1.bf16.msra.mxu0 %v845
    %868 = vmatprep.subr.bf16.mxu0 0
    %869 = vmatpush1.bf16.msra.mxu0 %v846
    %870 = vmatprep.subr.bf16.mxu0 0
    %871 = vmatpush1.bf16.msra.mxu0 0
    %872 = vmatprep.subr.bf16.mxu0 0
    %873 = vmatpush1.bf16.msra.mxu0 0
    %874 = vmatprep.subr.bf16.mxu0 0
    %875 = vmatpush1.bf16.msra.mxu0 0
    %876 = vmatprep.subr.bf16.mxu0 0
    %877 = vmatpush1.bf16.msra.mxu0 0
    %878 = vmatprep.subr.bf16.mxu0 0
    %879 = vmatpush1.bf16.msra.mxu0 0
    %880 = vmatprep.subr.bf16.mxu0 0
    %881 = vmatpush1.bf16.msra.mxu0 0
    %882 = vmatprep.subr.bf16.mxu0 0
    %883 = vmatpush1.bf16.msra.mxu0 0
    %884 = vmatprep.subr.bf16.mxu0 0
    %885 = vmatpush1.bf16.msra.mxu0 0
    %886 = vmatprep.subr.bf16.mxu0 0
    %887 = vmatpush1.bf16.msra.mxu0 0
    %888 = vmatprep.subr.bf16.mxu0 0
    %889 = vmatpush1.bf16.msra.mxu0 0
    %890 = vmatprep.subr.bf16.mxu0 0
    %891 = vmatpush1.bf16.msra.mxu0 0
    %892 = vmatprep.subr.bf16.mxu0 0
    %893 = vmatpush1.bf16.msra.mxu0 0
    %894 = vmatprep.subr.bf16.mxu0 0
    %895 = vmatpush1.bf16.msra.mxu0 0
    %896 = vmatprep.subr.bf16.mxu0 0
    %897 = vmatpush1.bf16.msra.mxu0 0
    %898 = vmatprep.mubr.bf16.mxu0 0
    %899 = vmatmul.mubr.bf16.gmra.mrb[0].mxu0 %v855
    %v900 = vpop.f32.mrb[0].mxu0
    %v901 = vadd.f32 %v852, %v900
    %v902 = vpop.f32.mrb[0].mxu0
    %v903 = vpop.f32.mrb[0].mxu0
    %v904 = vadd.f32 %v852, %v903
    %v905 = vpop.f32.mrb[0].mxu0
    %906 = vmatprep.mubr.bf16.mxu0 0
    %907 = vmatmul.mubr.bf16.gmra.mrb[0].mxu0 %v858
    %v908 = vpop.f32.mrb[0].mxu0
    %v909 = vadd.f32 %v852, %v908
    %v910 = vpop.f32.mrb[0].mxu0
    %v911 = vpop.f32.mrb[0].mxu0
    %v912 = vadd.f32 %v852, %v911
    %v913 = vpop.f32.mrb[0].mxu0
    %914 = vmatprep.mubr.bf16.mxu0 0
    %915 = vmatmul.mubr.bf16.gmra.mrb[0].mxu0 %v861
    %v916 = vpop.f32.mrb[0].mxu0
    %v917 = vadd.f32 %v852, %v916
    %v918 = vpop.f32.mrb[0].mxu0
    %v919 = vpop.f32.mrb[0].mxu0
    %v920 = vadd.f32 %v852, %v919
    %v921 = vpop.f32.mrb[0].mxu0
    %922 = vmatprep.mubr.bf16.mxu0 0
    %923 = vmatmul.mubr.bf16.gmra.mrb[0].mxu0 %v864
    %v924 = vpop.f32.mrb[0].mxu0
    %v925 = vadd.f32 %v852, %v924
    %v926 = vpop.f32.mrb[0].mxu0
    %v927 = vpop.f32.mrb[0].mxu0
    %v928 = vpop.f32.mrb[0].mxu0
    %929 = vdwg.mxu0
    %vm930 = vcmp.ge.f32.partialorder %v901, 0.0
    %vm931 = vcmp.ge.f32.partialorder %v904, 0.0
    %vm932 = vcmp.ge.f32.partialorder %v909, 0.0
    %vm933 = vcmp.ge.f32.partialorder %v912, 0.0
    %vm934 = vcmp.ge.f32.partialorder %v917, 0.0
    %vm935 = vcmp.ge.f32.partialorder %v920, 0.0
    %vm936 = vcmp.ge.f32.partialorder %v925, 0.0
    %v937 = vmul.f32 %v901, 0.01
    %v938 = vmul.f32 %v904, 0.01
    %v939 = vmul.f32 %v909, 0.01
    %v940 = vmul.f32 %v912, 0.01
    %v941 = vmul.f32 %v917, 0.01
    %v942 = vmul.f32 %v920, 0.01
    %v943 = vmul.f32 %v925, 0.01
    %v944 = vsel %vm930, %v901, %v937
    %v945 = vsel %vm931, %v904, %v938
    %v946 = vsel %vm932, %v909, %v939
    %v947 = vsel %vm933, %v912, %v940
    %v948 = vsel %vm934, %v917, %v941
    %v949 = vsel %vm935, %v920, %v942
    %v950 = vsel %vm936, %v925, %v943
    %v951 = vld [vmem:[%s41] sm:$0xff]
    %v952 = vld [vmem:[%s41 + $0x8] sm:$0xff]
    %v953 = vld [vmem:[%s41 + $0x10] sm:$0xff]
    %v954 = vld [vmem:[%s41 + $0x18] sm:$0xff]
    %v955 = vpack.c.bf16 %v945, %v944
    %v956 = vpack.c.bf16 %v947, %v946
    %v957 = vpack.c.bf16 %v949, %v948
    %v958 = vpack.c.bf16 %v950, %v950
    %v959 = vpack.c.bf16 %v952, %v951
    %v960 = vpack.c.bf16 %v954, %v953
    %v961 = vld [vmem:[%s43] sm:$0x1]
    %v963 = vlaneseq
    %v964 = vshrl.u32 %v963, 7
    %v965 = vsub.s32 0, %v964
    %v966 = vrot.slane %v961, %v965
    %v969 = vsel %vm458, %v955, 0
    %v972 = vsel %vm458, %v956, 0
    %v975 = vsel %vm458, %v957, 0
    %v978 = vsel %vm458, %v958, 0
    %980 = vmatprep.subr.bf16.mxu0 0
    %981 = vmatpush1.bf16.msra.mxu0 %v959
    %982 = vmatprep.subr.bf16.mxu0 0
    %983 = vmatpush1.bf16.msra.mxu0 %v960
    %984 = vmatprep.subr.bf16.mxu0 0
    %985 = vmatpush1.bf16.msra.mxu0 0
    %986 = vmatprep.subr.bf16.mxu0 0
    %987 = vmatpush1.bf16.msra.mxu0 0
    %988 = vmatprep.subr.bf16.mxu0 0
    %989 = vmatpush1.bf16.msra.mxu0 0
    %990 = vmatprep.subr.bf16.mxu0 0
    %991 = vmatpush1.bf16.msra.mxu0 0
    %992 = vmatprep.subr.bf16.mxu0 0
    %993 = vmatpush1.bf16.msra.mxu0 0
    %994 = vmatprep.subr.bf16.mxu0 0
    %995 = vmatpush1.bf16.msra.mxu0 0
    %996 = vmatprep.subr.bf16.mxu0 0
    %997 = vmatpush1.bf16.msra.mxu0 0
    %998 = vmatprep.subr.bf16.mxu0 0
    %999 = vmatpush1.bf16.msra.mxu0 0
    %1000 = vmatprep.subr.bf16.mxu0 0
    %1001 = vmatpush1.bf16.msra.mxu0 0
    %1002 = vmatprep.subr.bf16.mxu0 0
    %1003 = vmatpush1.bf16.msra.mxu0 0
    %1004 = vmatprep.subr.bf16.mxu0 0
    %1005 = vmatpush1.bf16.msra.mxu0 0
    %1006 = vmatprep.subr.bf16.mxu0 0
    %1007 = vmatpush1.bf16.msra.mxu0 0
    %1008 = vmatprep.subr.bf16.mxu0 0
    %1009 = vmatpush1.bf16.msra.mxu0 0
    %1010 = vmatprep.subr.bf16.mxu0 0
    %1011 = vmatpush1.bf16.msra.mxu0 0
    %1012 = vmatprep.mubr.bf16.mxu0 0
    %1013 = vmatmul.mubr.bf16.gmra.mrb[0].mxu0 %v969
    %v1014 = vpop.f32.mrb[0].mxu0
    %v1015 = vadd.f32 %v966, %v1014
    %v1016 = vpop.f32.mrb[0].mxu0
    %v1017 = vpop.f32.mrb[0].mxu0
    %v1018 = vadd.f32 %v966, %v1017
    %v1019 = vpop.f32.mrb[0].mxu0
    %1020 = vmatprep.mubr.bf16.mxu0 0
    %1021 = vmatmul.mubr.bf16.gmra.mrb[0].mxu0 %v972
    %v1022 = vpop.f32.mrb[0].mxu0
    %v1023 = vadd.f32 %v966, %v1022
    %v1024 = vpop.f32.mrb[0].mxu0
    %v1025 = vpop.f32.mrb[0].mxu0
    %v1026 = vadd.f32 %v966, %v1025
    %v1027 = vpop.f32.mrb[0].mxu0
    %1028 = vmatprep.mubr.bf16.mxu0 0
    %1029 = vmatmul.mubr.bf16.gmra.mrb[0].mxu0 %v975
    %v1030 = vpop.f32.mrb[0].mxu0
    %v1031 = vadd.f32 %v966, %v1030
    %v1032 = vpop.f32.mrb[0].mxu0
    %v1033 = vpop.f32.mrb[0].mxu0
    %v1034 = vadd.f32 %v966, %v1033
    %v1035 = vpop.f32.mrb[0].mxu0
    %1036 = vmatprep.mubr.bf16.mxu0 0
    %1037 = vmatmul.mubr.bf16.gmra.mrb[0].mxu0 %v978
    %v1038 = vpop.f32.mrb[0].mxu0
    %v1039 = vadd.f32 %v966, %v1038
    %v1040 = vpop.f32.mrb[0].mxu0
    %v1041 = vpop.f32.mrb[0].mxu0
    %v1042 = vpop.f32.mrb[0].mxu0
    %1043 = vdwg.mxu0
    %vm1044 = vcmp.ge.f32.partialorder %v1015, 0.0
    %vm1045 = vcmp.ge.f32.partialorder %v1018, 0.0
    %vm1046 = vcmp.ge.f32.partialorder %v1023, 0.0
    %vm1047 = vcmp.ge.f32.partialorder %v1026, 0.0
    %vm1048 = vcmp.ge.f32.partialorder %v1031, 0.0
    %vm1049 = vcmp.ge.f32.partialorder %v1034, 0.0
    %vm1050 = vcmp.ge.f32.partialorder %v1039, 0.0
    %v1051 = vmul.f32 %v1015, 0.01
    %v1052 = vmul.f32 %v1018, 0.01
    %v1053 = vmul.f32 %v1023, 0.01
    %v1054 = vmul.f32 %v1026, 0.01
    %v1055 = vmul.f32 %v1031, 0.01
    %v1056 = vmul.f32 %v1034, 0.01
    %v1057 = vmul.f32 %v1039, 0.01
    %v1058 = vsel %vm1044, %v1015, %v1051
    %v1059 = vsel %vm1045, %v1018, %v1052
    %v1060 = vsel %vm1046, %v1023, %v1053
    %v1061 = vsel %vm1047, %v1026, %v1054
    %v1062 = vsel %vm1048, %v1031, %v1055
    %v1063 = vsel %vm1049, %v1034, %v1056
    %v1064 = vsel %vm1050, %v1039, %v1057
    %1066 = vset.pattern.permute.xlu0 0
    %1067 = vperm.xlu0 %1066, %v526
    %v1068 = vpop.permute.xlu0 %1067
    %1071 = vset.pattern.permute.xlu0 0
    %1072 = vperm.xlu0 %1071, %v528
    %v1073 = vpop.permute.xlu0 %1072
    %1076 = vset.pattern.permute.xlu0 0
    %1077 = vperm.xlu0 %1076, %v530
    %v1078 = vpop.permute.xlu0 %1077
    %v1083 = vrot.slane %v1059, 4
    %v1084 = vrot.slane %v1060, 4
    %v1085 = vsel %vm778, %v1083, %v1084
    %v1086 = vrot.slane %v1061, 4
    %v1087 = vsel %vm778, %v1084, %v1086
    %v1091 = vmul.f32 %v1068, %v1085
    %v1092 = vmul.f32 %v1073, %v1087
    %v1093 = vmul.f32 %v1078, %v1086
    %1094 = vset.pattern.permute.xlu0 1
    %1095 = vperm.xlu0 %1094, %v526
    %v1096 = vpop.permute.xlu0 %1095
    %1098 = vset.pattern.permute.xlu0 1
    %1099 = vperm.xlu0 %1098, %v528
    %v1100 = vpop.permute.xlu0 %1099
    %1102 = vset.pattern.permute.xlu0 1
    %1103 = vperm.xlu0 %1102, %v530
    %v1104 = vpop.permute.xlu0 %1103
    %v1106 = vmul.f32 %v1096, %v1062
    %v1107 = vmul.f32 %v1100, %v1063
    %v1108 = vmul.f32 %v1104, %v1064
    %v1109 = vpack.c.bf16 %v1092, %v1091
    %v1110 = vpack.c.bf16 %v1093, %v1093
    %1111 = vxpose.xlu0.c.b16.start [1/8] %v187, 128
    %1112 = vxpose.xlu0.c.b16.cont [2/8] %v188, 128
    %1113 = vxpose.xlu0.c.b16.cont [3/8] 0, 128
    %1114 = vxpose.xlu0.c.b16.cont [4/8] 0, 128
    %1115 = vxpose.xlu0.c.b16.cont [5/8] 0, 128
    %1116 = vxpose.xlu0.c.b16.cont [6/8] 0, 128
    %1117 = vxpose.xlu0.c.b16.cont [7/8] 0, 128
    %1118 = vxpose.xlu0.c.b16.end [8/8] 0, 128
    %v1119 = vpop.trf.xlu0
    %v1120 = vpop.trf.xlu0
    %v1121 = vpop.trf.xlu0
    %v1122 = vpop.trf.xlu0
    %v1123 = vpop.trf.xlu0
    %v1124 = vpop.trf.xlu0
    %v1125 = vpop.trf.xlu0
    %v1126 = vpop.trf.xlu0
    %vm1127 = vcmask 162816
    %v1129 = vsel %vm1127, %v1119, 0
    %v1132 = vsel %vm549, %v1110, 0
    %1134 = vmatprep.subr.bf16.mxu0 0
    %1135 = vmatpush1.bf16.msra.mxu0 %v1109
    %1136 = vmatprep.subr.bf16.mxu0 0
    %1137 = vmatpush1.bf16.msra.mxu0 %v1132
    %1138 = vmatprep.subr.bf16.mxu0 0
    %1139 = vmatpush1.bf16.msra.mxu0 0
    %1140 = vmatprep.subr.bf16.mxu0 0
    %1141 = vmatpush1.bf16.msra.mxu0 0
    %1142 = vmatprep.subr.bf16.mxu0 0
    %1143 = vmatpush1.bf16.msra.mxu0 0
    %1144 = vmatprep.subr.bf16.mxu0 0
    %1145 = vmatpush1.bf16.msra.mxu0 0
    %1146 = vmatprep.subr.bf16.mxu0 0
    %1147 = vmatpush1.bf16.msra.mxu0 0
    %1148 = vmatprep.subr.bf16.mxu0 0
    %1149 = vmatpush1.bf16.msra.mxu0 0
    %1150 = vmatprep.subr.bf16.mxu0 0
    %1151 = vmatpush1.bf16.msra.mxu0 0
    %1152 = vmatprep.subr.bf16.mxu0 0
    %1153 = vmatpush1.bf16.msra.mxu0 0
    %1154 = vmatprep.subr.bf16.mxu0 0
    %1155 = vmatpush1.bf16.msra.mxu0 0
    %1156 = vmatprep.subr.bf16.mxu0 0
    %1157 = vmatpush1.bf16.msra.mxu0 0
    %1158 = vmatprep.subr.bf16.mxu0 0
    %1159 = vmatpush1.bf16.msra.mxu0 0
    %1160 = vmatprep.subr.bf16.mxu0 0
    %1161 = vmatpush1.bf16.msra.mxu0 0
    %1162 = vmatprep.subr.bf16.mxu0 0
    %1163 = vmatpush1.bf16.msra.mxu0 0
    %1164 = vmatprep.subr.bf16.mxu0 0
    %1165 = vmatpush1.bf16.msra.mxu0 0
    %1166 = vmatprep.mubr.bf16.mxu0 0
    %1167 = vmatmul.mubr.bf16.gmra.mrb[0].mxu0 %v1129
    %v1168 = vpop.f32.mrb[0].mxu0
    %v1169 = vadd.f32 0.0, %v1168
    %v1170 = vpop.f32.mrb[0].mxu0
    %v1171 = vpop.f32.mrb[0].mxu0
    %v1172 = vadd.f32 0.0, %v1171
    %v1173 = vpop.f32.mrb[0].mxu0
    %1174 = vdwg.mxu0
    %v1175 = vadd.f32 %v1058, %v1169
    %v1176 = vadd.f32 %v1059, %v1172
    %v1177 = vpack.c.bf16 %v1107, %v1106
    %v1178 = vpack.c.bf16 %v1108, %v1108
    %1179 = vxpose.xlu0.c.b16.start [1/8] %v210, 128
    %1180 = vxpose.xlu0.c.b16.cont [2/8] %v211, 128
    %1181 = vxpose.xlu0.c.b16.cont [3/8] 0, 128
    %1182 = vxpose.xlu0.c.b16.cont [4/8] 0, 128
    %1183 = vxpose.xlu0.c.b16.cont [5/8] 0, 128
    %1184 = vxpose.xlu0.c.b16.cont [6/8] 0, 128
    %1185 = vxpose.xlu0.c.b16.cont [7/8] 0, 128
    %1186 = vxpose.xlu0.c.b16.end [8/8] 0, 128
    %v1187 = vpop.trf.xlu0
    %v1188 = vpop.trf.xlu0
    %v1189 = vpop.trf.xlu0
    %v1190 = vpop.trf.xlu0
    %v1191 = vpop.trf.xlu0
    %v1192 = vpop.trf.xlu0
    %v1193 = vpop.trf.xlu0
    %v1194 = vpop.trf.xlu0
    %v1196 = vsel %vm1127, %v1187, 0
    %v1199 = vsel %vm549, %v1178, 0
    %1201 = vmatprep.subr.bf16.mxu0 0
    %1202 = vmatpush1.bf16.msra.mxu0 %v1177
    %1203 = vmatprep.subr.bf16.mxu0 0
    %1204 = vmatpush1.bf16.msra.mxu0 %v1199
    %1205 = vmatprep.subr.bf16.mxu0 0
    %1206 = vmatpush1.bf16.msra.mxu0 0
    %1207 = vmatprep.subr.bf16.mxu0 0
    %1208 = vmatpush1.bf16.msra.mxu0 0
    %1209 = vmatprep.subr.bf16.mxu0 0
    %1210 = vmatpush1.bf16.msra.mxu0 0
    %1211 = vmatprep.subr.bf16.mxu0 0
    %1212 = vmatpush1.bf16.msra.mxu0 0
    %1213 = vmatprep.subr.bf16.mxu0 0
    %1214 = vmatpush1.bf16.msra.mxu0 0
    %1215 = vmatprep.subr.bf16.mxu0 0
    %1216 = vmatpush1.bf16.msra.mxu0 0
    %1217 = vmatprep.subr.bf16.mxu0 0
    %1218 = vmatpush1.bf16.msra.mxu0 0
    %1219 = vmatprep.subr.bf16.mxu0 0
    %1220 = vmatpush1.bf16.msra.mxu0 0
    %1221 = vmatprep.subr.bf16.mxu0 0
    %1222 = vmatpush1.bf16.msra.mxu0 0
    %1223 = vmatprep.subr.bf16.mxu0 0
    %1224 = vmatpush1.bf16.msra.mxu0 0
    %1225 = vmatprep.subr.bf16.mxu0 0
    %1226 = vmatpush1.bf16.msra.mxu0 0
    %1227 = vmatprep.subr.bf16.mxu0 0
    %1228 = vmatpush1.bf16.msra.mxu0 0
    %1229 = vmatprep.subr.bf16.mxu0 0
    %1230 = vmatpush1.bf16.msra.mxu0 0
    %1231 = vmatprep.subr.bf16.mxu0 0
    %1232 = vmatpush1.bf16.msra.mxu0 0
    %1233 = vmatprep.mubr.bf16.mxu0 0
    %1234 = vmatmul.mubr.bf16.gmra.mrb[0].mxu0 %v1196
    %v1235 = vpop.f32.mrb[0].mxu0
    %v1236 = vadd.f32 0.0, %v1235
    %v1237 = vpop.f32.mrb[0].mxu0
    %v1238 = vpop.f32.mrb[0].mxu0
    %v1239 = vadd.f32 0.0, %v1238
    %v1240 = vpop.f32.mrb[0].mxu0
    %1241 = vdwg.mxu0
    %v1242 = vadd.f32 %v1175, %v1236
    %v1243 = vadd.f32 %v1176, %v1239
    %v1244 = vpack.c.bf16 %v1243, %v1242
    %v1246 = vsel %vm231, %v1244, 0
    %1248 = vmatprep.subr.bf16.mxu0 0
    %1249 = vmatpush1.bf16.msra.mxu0 %v1246
    %1250 = vmatprep.subr.bf16.mxu0 0
    %1251 = vmatpush1.bf16.msra.mxu0 0
    %1252 = vmatprep.subr.bf16.mxu0 0
    %1253 = vmatpush1.bf16.msra.mxu0 0
    %1254 = vmatprep.subr.bf16.mxu0 0
    %1255 = vmatpush1.bf16.msra.mxu0 0
    %1256 = vmatprep.subr.bf16.mxu0 0
    %1257 = vmatpush1.bf16.msra.mxu0 0
    %1258 = vmatprep.subr.bf16.mxu0 0
    %1259 = vmatpush1.bf16.msra.mxu0 0
    %1260 = vmatprep.subr.bf16.mxu0 0
    %1261 = vmatpush1.bf16.msra.mxu0 0
    %1262 = vmatprep.subr.bf16.mxu0 0
    %1263 = vmatpush1.bf16.msra.mxu0 0
    %1264 = vmatprep.subr.bf16.mxu0 0
    %1265 = vmatpush1.bf16.msra.mxu0 0
    %1266 = vmatprep.subr.bf16.mxu0 0
    %1267 = vmatpush1.bf16.msra.mxu0 0
    %1268 = vmatprep.subr.bf16.mxu0 0
    %1269 = vmatpush1.bf16.msra.mxu0 0
    %1270 = vmatprep.subr.bf16.mxu0 0
    %1271 = vmatpush1.bf16.msra.mxu0 0
    %1272 = vmatprep.subr.bf16.mxu0 0
    %1273 = vmatpush1.bf16.msra.mxu0 0
    %1274 = vmatprep.subr.bf16.mxu0 0
    %1275 = vmatpush1.bf16.msra.mxu0 0
    %1276 = vmatprep.subr.bf16.mxu0 0
    %1277 = vmatpush1.bf16.msra.mxu0 0
    %1278 = vmatprep.subr.bf16.mxu0 0
    %1279 = vmatpush1.bf16.msra.mxu0 0
    %1280 = vmatprep.mubr.bf16.mxu0 0
    %1281 = vmatmul.mubr.bf16.gmra.mrb[0].mxu0 %v665
    %v1282 = vpop.f32.mrb[0].mxu0
    %v1283 = vadd.f32 0.0, %v1282
    %v1284 = vpop.f32.mrb[0].mxu0
    %v1285 = vpop.f32.mrb[0].mxu0
    %v1286 = vadd.f32 0.0, %v1285
    %v1287 = vpop.f32.mrb[0].mxu0
    %1288 = vmatprep.mubr.bf16.mxu0 0
    %1289 = vmatmul.mubr.bf16.gmra.mrb[0].mxu0 %v668
    %v1290 = vpop.f32.mrb[0].mxu0
    %v1291 = vadd.f32 0.0, %v1290
    %v1292 = vpop.f32.mrb[0].mxu0
    %v1293 = vpop.f32.mrb[0].mxu0
    %v1294 = vpop.f32.mrb[0].mxu0
    %1295 = vdwg.mxu0
    %1296 = vmatprep.subr.bf16.mxu0 0
    %1297 = vmatpush1.bf16.msra.mxu0 %v1246
    %1298 = vmatprep.subr.bf16.mxu0 0
    %1299 = vmatpush1.bf16.msra.mxu0 0
    %1300 = vmatprep.subr.bf16.mxu0 0
    %1301 = vmatpush1.bf16.msra.mxu0 0
    %1302 = vmatprep.subr.bf16.mxu0 0
    %1303 = vmatpush1.bf16.msra.mxu0 0
    %1304 = vmatprep.subr.bf16.mxu0 0
    %1305 = vmatpush1.bf16.msra.mxu0 0
    %1306 = vmatprep.subr.bf16.mxu0 0
    %1307 = vmatpush1.bf16.msra.mxu0 0
    %1308 = vmatprep.subr.bf16.mxu0 0
    %1309 = vmatpush1.bf16.msra.mxu0 0
    %1310 = vmatprep.subr.bf16.mxu0 0
    %1311 = vmatpush1.bf16.msra.mxu0 0
    %1312 = vmatprep.subr.bf16.mxu0 0
    %1313 = vmatpush1.bf16.msra.mxu0 0
    %1314 = vmatprep.subr.bf16.mxu0 0
    %1315 = vmatpush1.bf16.msra.mxu0 0
    %1316 = vmatprep.subr.bf16.mxu0 0
    %1317 = vmatpush1.bf16.msra.mxu0 0
    %1318 = vmatprep.subr.bf16.mxu0 0
    %1319 = vmatpush1.bf16.msra.mxu0 0
    %1320 = vmatprep.subr.bf16.mxu0 0
    %1321 = vmatpush1.bf16.msra.mxu0 0
    %1322 = vmatprep.subr.bf16.mxu0 0
    %1323 = vmatpush1.bf16.msra.mxu0 0
    %1324 = vmatprep.subr.bf16.mxu0 0
    %1325 = vmatpush1.bf16.msra.mxu0 0
    %1326 = vmatprep.subr.bf16.mxu0 0
    %1327 = vmatpush1.bf16.msra.mxu0 0
    %1328 = vmatprep.mubr.bf16.mxu0 0
    %1329 = vmatmul.mubr.bf16.gmra.mrb[0].mxu0 %v722
    %v1330 = vpop.f32.mrb[0].mxu0
    %v1331 = vadd.f32 0.0, %v1330
    %v1332 = vpop.f32.mrb[0].mxu0
    %v1333 = vpop.f32.mrb[0].mxu0
    %v1334 = vadd.f32 0.0, %v1333
    %v1335 = vpop.f32.mrb[0].mxu0
    %1336 = vmatprep.mubr.bf16.mxu0 0
    %1337 = vmatmul.mubr.bf16.gmra.mrb[0].mxu0 %v725
    %v1338 = vpop.f32.mrb[0].mxu0
    %v1339 = vadd.f32 0.0, %v1338
    %v1340 = vpop.f32.mrb[0].mxu0
    %v1341 = vpop.f32.mrb[0].mxu0
    %v1342 = vpop.f32.mrb[0].mxu0
    %1343 = vdwg.mxu0
    %v1347 = vrot.slane %v1283, 4
    %v1348 = vrot.slane %v1286, 4
    %v1349 = vsel %vm778, %v1347, %v1348
    %v1350 = vrot.slane %v1291, 4
    %v1351 = vsel %vm778, %v1348, %v1350
    %v1355 = vsel %vm778, %v1243, %v1347
    %v1356 = vsub.f32 %v1331, %v1283
    %v1357 = vsub.f32 %v1334, %v1286
    %v1358 = vsub.f32 %v1339, %v1291
    %v1359 = vsub.f32 %v1283, %v1331
    %v1360 = vsub.f32 %v1286, %v1334
    %v1361 = vsub.f32 %v1291, %v1339
    %v1365 = vrot.slane %v1356, 4
    %v1366 = vrot.slane %v1357, 4
    %v1367 = vsel %vm778, %v1365, %v1366
    %v1368 = vrot.slane %v1358, 4
    %v1369 = vsel %vm778, %v1366, %v1368
    %v1371 = vsel %vm778, 0.0, %v1365
    %1376 = vrot.lane.b32.xlu0 %v1371, 16
    %v1377 = vpop.permute.xlu0 %1376
    %1378 = vrot.lane.b32.xlu0 %v1367, 16
    %v1379 = vpop.permute.xlu0 %1378
    %1380 = vrot.lane.b32.xlu0 %v1369, 16
    %v1381 = vpop.permute.xlu0 %1380
    %1382 = vrot.lane.b32.xlu0 %v1359, 16
    %v1383 = vpop.permute.xlu0 %1382
    %1384 = vrot.lane.b32.xlu0 %v1360, 16
    %v1385 = vpop.permute.xlu0 %1384
    %1386 = vrot.lane.b32.xlu0 %v1361, 16
    %v1387 = vpop.permute.xlu0 %1386
    %v1394 = vsel %vm304, %v1242, %v810
    %v1395 = vsel %vm304, %v1355, %v1377
    %v1396 = vsel %vm304, %v1349, %v1379
    %v1397 = vsel %vm304, %v1351, %v1381
    %v1398 = vsel %vm304, %v1331, %v1383
    %v1399 = vsel %vm304, %v1334, %v1385
    %v1400 = vsel %vm304, %v1339, %v1387
    %v1401 = vld [vmem:[%s45] sm:$0xff]
    %v1402 = vld [vmem:[%s45 + $0x8] sm:$0xff]
    %v1403 = vld [vmem:[%s45 + $0x10] sm:$0xff]
    %v1404 = vld [vmem:[%s45 + $0x18] sm:$0xff]
    %v1405 = vpack.c.bf16 %v1395, %v1394
    %v1406 = vpack.c.bf16 %v1397, %v1396
    %v1407 = vpack.c.bf16 %v1399, %v1398
    %v1408 = vpack.c.bf16 %v1400, %v1400
    %v1409 = vpack.c.bf16 %v1402, %v1401
    %v1410 = vpack.c.bf16 %v1404, %v1403
    %v1411 = vld [vmem:[%s47] sm:$0x1]
    %v1413 = vlaneseq
    %v1414 = vshrl.u32 %v1413, 7
    %v1415 = vsub.s32 0, %v1414
    %v1416 = vrot.slane %v1411, %v1415
    %v1419 = vsel %vm458, %v1405, 0
    %v1422 = vsel %vm458, %v1406, 0
    %v1425 = vsel %vm458, %v1407, 0
    %v1428 = vsel %vm458, %v1408, 0
    %1430 = vmatprep.subr.bf16.mxu0 0
    %1431 = vmatpush1.bf16.msra.mxu0 %v1409
    %1432 = vmatprep.subr.bf16.mxu0 0
    %1433 = vmatpush1.bf16.msra.mxu0 %v1410
    %1434 = vmatprep.subr.bf16.mxu0 0
    %1435 = vmatpush1.bf16.msra.mxu0 0
    %1436 = vmatprep.subr.bf16.mxu0 0
    %1437 = vmatpush1.bf16.msra.mxu0 0
    %1438 = vmatprep.subr.bf16.mxu0 0
    %1439 = vmatpush1.bf16.msra.mxu0 0
    %1440 = vmatprep.subr.bf16.mxu0 0
    %1441 = vmatpush1.bf16.msra.mxu0 0
    %1442 = vmatprep.subr.bf16.mxu0 0
    %1443 = vmatpush1.bf16.msra.mxu0 0
    %1444 = vmatprep.subr.bf16.mxu0 0
    %1445 = vmatpush1.bf16.msra.mxu0 0
    %1446 = vmatprep.subr.bf16.mxu0 0
    %1447 = vmatpush1.bf16.msra.mxu0 0
    %1448 = vmatprep.subr.bf16.mxu0 0
    %1449 = vmatpush1.bf16.msra.mxu0 0
    %1450 = vmatprep.subr.bf16.mxu0 0
    %1451 = vmatpush1.bf16.msra.mxu0 0
    %1452 = vmatprep.subr.bf16.mxu0 0
    %1453 = vmatpush1.bf16.msra.mxu0 0
    %1454 = vmatprep.subr.bf16.mxu0 0
    %1455 = vmatpush1.bf16.msra.mxu0 0
    %1456 = vmatprep.subr.bf16.mxu0 0
    %1457 = vmatpush1.bf16.msra.mxu0 0
    %1458 = vmatprep.subr.bf16.mxu0 0
    %1459 = vmatpush1.bf16.msra.mxu0 0
    %1460 = vmatprep.subr.bf16.mxu0 0
    %1461 = vmatpush1.bf16.msra.mxu0 0
    %1462 = vmatprep.mubr.bf16.mxu0 0
    %1463 = vmatmul.mubr.bf16.gmra.mrb[0].mxu0 %v1419
    %v1464 = vpop.f32.mrb[0].mxu0
    %v1465 = vadd.f32 %v1416, %v1464
    %v1466 = vpop.f32.mrb[0].mxu0
    %v1467 = vpop.f32.mrb[0].mxu0
    %v1468 = vadd.f32 %v1416, %v1467
    %v1469 = vpop.f32.mrb[0].mxu0
    %1470 = vmatprep.mubr.bf16.mxu0 0
    %1471 = vmatmul.mubr.bf16.gmra.mrb[0].mxu0 %v1422
    %v1472 = vpop.f32.mrb[0].mxu0
    %v1473 = vadd.f32 %v1416, %v1472
    %v1474 = vpop.f32.mrb[0].mxu0
    %v1475 = vpop.f32.mrb[0].mxu0
    %v1476 = vadd.f32 %v1416, %v1475
    %v1477 = vpop.f32.mrb[0].mxu0
    %1478 = vmatprep.mubr.bf16.mxu0 0
    %1479 = vmatmul.mubr.bf16.gmra.mrb[0].mxu0 %v1425
    %v1480 = vpop.f32.mrb[0].mxu0
    %v1481 = vadd.f32 %v1416, %v1480
    %v1482 = vpop.f32.mrb[0].mxu0
    %v1483 = vpop.f32.mrb[0].mxu0
    %v1484 = vadd.f32 %v1416, %v1483
    %v1485 = vpop.f32.mrb[0].mxu0
    %1486 = vmatprep.mubr.bf16.mxu0 0
    %1487 = vmatmul.mubr.bf16.gmra.mrb[0].mxu0 %v1428
    %v1488 = vpop.f32.mrb[0].mxu0
    %v1489 = vadd.f32 %v1416, %v1488
    %v1490 = vpop.f32.mrb[0].mxu0
    %v1491 = vpop.f32.mrb[0].mxu0
    %v1492 = vpop.f32.mrb[0].mxu0
    %1493 = vdwg.mxu0
    %vm1494 = vcmp.ge.f32.partialorder %v1465, 0.0
    %vm1495 = vcmp.ge.f32.partialorder %v1468, 0.0
    %vm1496 = vcmp.ge.f32.partialorder %v1473, 0.0
    %vm1497 = vcmp.ge.f32.partialorder %v1476, 0.0
    %vm1498 = vcmp.ge.f32.partialorder %v1481, 0.0
    %vm1499 = vcmp.ge.f32.partialorder %v1484, 0.0
    %vm1500 = vcmp.ge.f32.partialorder %v1489, 0.0
    %v1501 = vmul.f32 %v1465, 0.01
    %v1502 = vmul.f32 %v1468, 0.01
    %v1503 = vmul.f32 %v1473, 0.01
    %v1504 = vmul.f32 %v1476, 0.01
    %v1505 = vmul.f32 %v1481, 0.01
    %v1506 = vmul.f32 %v1484, 0.01
    %v1507 = vmul.f32 %v1489, 0.01
    %v1508 = vsel %vm1494, %v1465, %v1501
    %v1509 = vsel %vm1495, %v1468, %v1502
    %v1510 = vsel %vm1496, %v1473, %v1503
    %v1511 = vsel %vm1497, %v1476, %v1504
    %v1512 = vsel %vm1498, %v1481, %v1505
    %v1513 = vsel %vm1499, %v1484, %v1506
    %v1514 = vsel %vm1500, %v1489, %v1507
    %v1515 = vld [vmem:[%s49] sm:$0xff]
    %v1516 = vld [vmem:[%s49 + $0x8] sm:$0xff]
    %v1517 = vld [vmem:[%s49 + $0x10] sm:$0xff]
    %v1518 = vld [vmem:[%s49 + $0x18] sm:$0xff]
    %v1519 = vpack.c.bf16 %v1509, %v1508
    %v1520 = vpack.c.bf16 %v1511, %v1510
    %v1521 = vpack.c.bf16 %v1513, %v1512
    %v1522 = vpack.c.bf16 %v1514, %v1514
    %v1523 = vpack.c.bf16 %v1516, %v1515
    %v1524 = vpack.c.bf16 %v1518, %v1517
    %v1525 = vld [vmem:[%s51] sm:$0x1]
    %v1527 = vlaneseq
    %v1528 = vshrl.u32 %v1527, 7
    %v1529 = vsub.s32 0, %v1528
    %v1530 = vrot.slane %v1525, %v1529
    %v1533 = vsel %vm458, %v1519, 0
    %v1536 = vsel %vm458, %v1520, 0
    %v1539 = vsel %vm458, %v1521, 0
    %v1542 = vsel %vm458, %v1522, 0
    %1544 = vmatprep.subr.bf16.mxu0 0
    %1545 = vmatpush1.bf16.msra.mxu0 %v1523
    %1546 = vmatprep.subr.bf16.mxu0 0
    %1547 = vmatpush1.bf16.msra.mxu0 %v1524
    %1548 = vmatprep.subr.bf16.mxu0 0
    %1549 = vmatpush1.bf16.msra.mxu0 0
    %1550 = vmatprep.subr.bf16.mxu0 0
    %1551 = vmatpush1.bf16.msra.mxu0 0
    %1552 = vmatprep.subr.bf16.mxu0 0
    %1553 = vmatpush1.bf16.msra.mxu0 0
    %1554 = vmatprep.subr.bf16.mxu0 0
    %1555 = vmatpush1.bf16.msra.mxu0 0
    %1556 = vmatprep.subr.bf16.mxu0 0
    %1557 = vmatpush1.bf16.msra.mxu0 0
    %1558 = vmatprep.subr.bf16.mxu0 0
    %1559 = vmatpush1.bf16.msra.mxu0 0
    %1560 = vmatprep.subr.bf16.mxu0 0
    %1561 = vmatpush1.bf16.msra.mxu0 0
    %1562 = vmatprep.subr.bf16.mxu0 0
    %1563 = vmatpush1.bf16.msra.mxu0 0
    %1564 = vmatprep.subr.bf16.mxu0 0
    %1565 = vmatpush1.bf16.msra.mxu0 0
    %1566 = vmatprep.subr.bf16.mxu0 0
    %1567 = vmatpush1.bf16.msra.mxu0 0
    %1568 = vmatprep.subr.bf16.mxu0 0
    %1569 = vmatpush1.bf16.msra.mxu0 0
    %1570 = vmatprep.subr.bf16.mxu0 0
    %1571 = vmatpush1.bf16.msra.mxu0 0
    %1572 = vmatprep.subr.bf16.mxu0 0
    %1573 = vmatpush1.bf16.msra.mxu0 0
    %1574 = vmatprep.subr.bf16.mxu0 0
    %1575 = vmatpush1.bf16.msra.mxu0 0
    %1576 = vmatprep.mubr.bf16.mxu0 0
    %1577 = vmatmul.mubr.bf16.gmra.mrb[0].mxu0 %v1533
    %v1578 = vpop.f32.mrb[0].mxu0
    %v1579 = vadd.f32 %v1530, %v1578
    %v1580 = vpop.f32.mrb[0].mxu0
    %v1581 = vpop.f32.mrb[0].mxu0
    %v1582 = vadd.f32 %v1530, %v1581
    %v1583 = vpop.f32.mrb[0].mxu0
    %1584 = vmatprep.mubr.bf16.mxu0 0
    %1585 = vmatmul.mubr.bf16.gmra.mrb[0].mxu0 %v1536
    %v1586 = vpop.f32.mrb[0].mxu0
    %v1587 = vadd.f32 %v1530, %v1586
    %v1588 = vpop.f32.mrb[0].mxu0
    %v1589 = vpop.f32.mrb[0].mxu0
    %v1590 = vadd.f32 %v1530, %v1589
    %v1591 = vpop.f32.mrb[0].mxu0
    %1592 = vmatprep.mubr.bf16.mxu0 0
    %1593 = vmatmul.mubr.bf16.gmra.mrb[0].mxu0 %v1539
    %v1594 = vpop.f32.mrb[0].mxu0
    %v1595 = vadd.f32 %v1530, %v1594
    %v1596 = vpop.f32.mrb[0].mxu0
    %v1597 = vpop.f32.mrb[0].mxu0
    %v1598 = vadd.f32 %v1530, %v1597
    %v1599 = vpop.f32.mrb[0].mxu0
    %1600 = vmatprep.mubr.bf16.mxu0 0
    %1601 = vmatmul.mubr.bf16.gmra.mrb[0].mxu0 %v1542
    %v1602 = vpop.f32.mrb[0].mxu0
    %v1603 = vadd.f32 %v1530, %v1602
    %v1604 = vpop.f32.mrb[0].mxu0
    %v1605 = vpop.f32.mrb[0].mxu0
    %v1606 = vpop.f32.mrb[0].mxu0
    %1607 = vdwg.mxu0
    %vm1608 = vcmp.ge.f32.partialorder %v1579, 0.0
    %vm1609 = vcmp.ge.f32.partialorder %v1582, 0.0
    %vm1610 = vcmp.ge.f32.partialorder %v1587, 0.0
    %vm1611 = vcmp.ge.f32.partialorder %v1590, 0.0
    %vm1612 = vcmp.ge.f32.partialorder %v1595, 0.0
    %vm1613 = vcmp.ge.f32.partialorder %v1598, 0.0
    %vm1614 = vcmp.ge.f32.partialorder %v1603, 0.0
    %v1615 = vmul.f32 %v1579, 0.01
    %v1616 = vmul.f32 %v1582, 0.01
    %v1617 = vmul.f32 %v1587, 0.01
    %v1618 = vmul.f32 %v1590, 0.01
    %v1619 = vmul.f32 %v1595, 0.01
    %v1620 = vmul.f32 %v1598, 0.01
    %v1621 = vmul.f32 %v1603, 0.01
    %v1622 = vsel %vm1608, %v1579, %v1615
    %v1623 = vsel %vm1609, %v1582, %v1616
    %v1624 = vsel %vm1610, %v1587, %v1617
    %v1625 = vsel %vm1611, %v1590, %v1618
    %v1626 = vsel %vm1612, %v1595, %v1619
    %v1627 = vsel %vm1613, %v1598, %v1620
    %v1628 = vsel %vm1614, %v1603, %v1621
    %v1632 = vrot.slane %v1623, 4
    %v1633 = vrot.slane %v1624, 4
    %v1634 = vsel %vm778, %v1632, %v1633
    %v1635 = vrot.slane %v1625, 4
    %v1636 = vsel %vm778, %v1633, %v1635
    %v1640 = vmul.f32 %v1068, %v1634
    %v1641 = vmul.f32 %v1073, %v1636
    %v1642 = vmul.f32 %v1078, %v1635
    %v1643 = vmul.f32 %v1096, %v1626
    %v1644 = vmul.f32 %v1100, %v1627
    %v1645 = vmul.f32 %v1104, %v1628
    %v1646 = vpack.c.bf16 %v1641, %v1640
    %v1647 = vpack.c.bf16 %v1642, %v1642
    %v1649 = vsel %vm549, %v1647, 0
    %1651 = vmatprep.subr.bf16.mxu0 0
    %1652 = vmatpush1.bf16.msra.mxu0 %v1646
    %1653 = vmatprep.subr.bf16.mxu0 0
    %1654 = vmatpush1.bf16.msra.mxu0 %v1649
    %1655 = vmatprep.subr.bf16.mxu0 0
    %1656 = vmatpush1.bf16.msra.mxu0 0
    %1657 = vmatprep.subr.bf16.mxu0 0
    %1658 = vmatpush1.bf16.msra.mxu0 0
    %1659 = vmatprep.subr.bf16.mxu0 0
    %1660 = vmatpush1.bf16.msra.mxu0 0
    %1661 = vmatprep.subr.bf16.mxu0 0
    %1662 = vmatpush1.bf16.msra.mxu0 0
    %1663 = vmatprep.subr.bf16.mxu0 0
    %1664 = vmatpush1.bf16.msra.mxu0 0
    %1665 = vmatprep.subr.bf16.mxu0 0
    %1666 = vmatpush1.bf16.msra.mxu0 0
    %1667 = vmatprep.subr.bf16.mxu0 0
    %1668 = vmatpush1.bf16.msra.mxu0 0
    %1669 = vmatprep.subr.bf16.mxu0 0
    %1670 = vmatpush1.bf16.msra.mxu0 0
    %1671 = vmatprep.subr.bf16.mxu0 0
    %1672 = vmatpush1.bf16.msra.mxu0 0
    %1673 = vmatprep.subr.bf16.mxu0 0
    %1674 = vmatpush1.bf16.msra.mxu0 0
    %1675 = vmatprep.subr.bf16.mxu0 0
    %1676 = vmatpush1.bf16.msra.mxu0 0
    %1677 = vmatprep.subr.bf16.mxu0 0
    %1678 = vmatpush1.bf16.msra.mxu0 0
    %1679 = vmatprep.subr.bf16.mxu0 0
    %1680 = vmatpush1.bf16.msra.mxu0 0
    %1681 = vmatprep.subr.bf16.mxu0 0
    %1682 = vmatpush1.bf16.msra.mxu0 0
    %1683 = vmatprep.mubr.bf16.mxu0 0
    %1684 = vmatmul.mubr.bf16.gmra.mrb[0].mxu0 %v1129
    %v1685 = vpop.f32.mrb[0].mxu0
    %v1686 = vadd.f32 0.0, %v1685
    %v1687 = vpop.f32.mrb[0].mxu0
    %v1688 = vpop.f32.mrb[0].mxu0
    %v1689 = vadd.f32 0.0, %v1688
    %v1690 = vpop.f32.mrb[0].mxu0
    %1691 = vdwg.mxu0
    %v1692 = vadd.f32 %v1622, %v1686
    %v1693 = vadd.f32 %v1623, %v1689
    %v1694 = vpack.c.bf16 %v1644, %v1643
    %v1695 = vpack.c.bf16 %v1645, %v1645
    %v1697 = vsel %vm549, %v1695, 0
    %1699 = vmatprep.subr.bf16.mxu0 0
    %1700 = vmatpush1.bf16.msra.mxu0 %v1694
    %1701 = vmatprep.subr.bf16.mxu0 0
    %1702 = vmatpush1.bf16.msra.mxu0 %v1697
    %1703 = vmatprep.subr.bf16.mxu0 0
    %1704 = vmatpush1.bf16.msra.mxu0 0
    %1705 = vmatprep.subr.bf16.mxu0 0
    %1706 = vmatpush1.bf16.msra.mxu0 0
    %1707 = vmatprep.subr.bf16.mxu0 0
    %1708 = vmatpush1.bf16.msra.mxu0 0
    %1709 = vmatprep.subr.bf16.mxu0 0
    %1710 = vmatpush1.bf16.msra.mxu0 0
    %1711 = vmatprep.subr.bf16.mxu0 0
    %1712 = vmatpush1.bf16.msra.mxu0 0
    %1713 = vmatprep.subr.bf16.mxu0 0
    %1714 = vmatpush1.bf16.msra.mxu0 0
    %1715 = vmatprep.subr.bf16.mxu0 0
    %1716 = vmatpush1.bf16.msra.mxu0 0
    %1717 = vmatprep.subr.bf16.mxu0 0
    %1718 = vmatpush1.bf16.msra.mxu0 0
    %1719 = vmatprep.subr.bf16.mxu0 0
    %1720 = vmatpush1.bf16.msra.mxu0 0
    %1721 = vmatprep.subr.bf16.mxu0 0
    %1722 = vmatpush1.bf16.msra.mxu0 0
    %1723 = vmatprep.subr.bf16.mxu0 0
    %1724 = vmatpush1.bf16.msra.mxu0 0
    %1725 = vmatprep.subr.bf16.mxu0 0
    %1726 = vmatpush1.bf16.msra.mxu0 0
    %1727 = vmatprep.subr.bf16.mxu0 0
    %1728 = vmatpush1.bf16.msra.mxu0 0
    %1729 = vmatprep.subr.bf16.mxu0 0
    %1730 = vmatpush1.bf16.msra.mxu0 0
    %1731 = vmatprep.mubr.bf16.mxu0 0
    %1732 = vmatmul.mubr.bf16.gmra.mrb[0].mxu0 %v1196
    %v1733 = vpop.f32.mrb[0].mxu0
    %v1734 = vadd.f32 0.0, %v1733
    %v1735 = vpop.f32.mrb[0].mxu0
    %v1736 = vpop.f32.mrb[0].mxu0
    %v1737 = vadd.f32 0.0, %v1736
    %v1738 = vpop.f32.mrb[0].mxu0
    %1739 = vdwg.mxu0
    %v1740 = vadd.f32 %v1692, %v1734
    %v1741 = vadd.f32 %v1693, %v1737
    %v1742 = vpack.c.bf16 %v1741, %v1740
    %v1744 = vsel %vm231, %v1742, 0
    %1746 = vmatprep.subr.bf16.mxu0 0
    %1747 = vmatpush1.bf16.msra.mxu0 %v1744
    %1748 = vmatprep.subr.bf16.mxu0 0
    %1749 = vmatpush1.bf16.msra.mxu0 0
    %1750 = vmatprep.subr.bf16.mxu0 0
    %1751 = vmatpush1.bf16.msra.mxu0 0
    %1752 = vmatprep.subr.bf16.mxu0 0
    %1753 = vmatpush1.bf16.msra.mxu0 0
    %1754 = vmatprep.subr.bf16.mxu0 0
    %1755 = vmatpush1.bf16.msra.mxu0 0
    %1756 = vmatprep.subr.bf16.mxu0 0
    %1757 = vmatpush1.bf16.msra.mxu0 0
    %1758 = vmatprep.subr.bf16.mxu0 0
    %1759 = vmatpush1.bf16.msra.mxu0 0
    %1760 = vmatprep.subr.bf16.mxu0 0
    %1761 = vmatpush1.bf16.msra.mxu0 0
    %1762 = vmatprep.subr.bf16.mxu0 0
    %1763 = vmatpush1.bf16.msra.mxu0 0
    %1764 = vmatprep.subr.bf16.mxu0 0
    %1765 = vmatpush1.bf16.msra.mxu0 0
    %1766 = vmatprep.subr.bf16.mxu0 0
    %1767 = vmatpush1.bf16.msra.mxu0 0
    %1768 = vmatprep.subr.bf16.mxu0 0
    %1769 = vmatpush1.bf16.msra.mxu0 0
    %1770 = vmatprep.subr.bf16.mxu0 0
    %1771 = vmatpush1.bf16.msra.mxu0 0
    %1772 = vmatprep.subr.bf16.mxu0 0
    %1773 = vmatpush1.bf16.msra.mxu0 0
    %1774 = vmatprep.subr.bf16.mxu0 0
    %1775 = vmatpush1.bf16.msra.mxu0 0
    %1776 = vmatprep.subr.bf16.mxu0 0
    %1777 = vmatpush1.bf16.msra.mxu0 0
    %1778 = vmatprep.mubr.bf16.mxu0 0
    %1779 = vmatmul.mubr.bf16.gmra.mrb[0].mxu0 %v665
    %v1780 = vpop.f32.mrb[0].mxu0
    %v1781 = vadd.f32 0.0, %v1780
    %v1782 = vpop.f32.mrb[0].mxu0
    %v1783 = vpop.f32.mrb[0].mxu0
    %v1784 = vadd.f32 0.0, %v1783
    %v1785 = vpop.f32.mrb[0].mxu0
    %1786 = vmatprep.mubr.bf16.mxu0 0
    %1787 = vmatmul.mubr.bf16.gmra.mrb[0].mxu0 %v668
    %v1788 = vpop.f32.mrb[0].mxu0
    %v1789 = vadd.f32 0.0, %v1788
    %v1790 = vpop.f32.mrb[0].mxu0
    %v1791 = vpop.f32.mrb[0].mxu0
    %v1792 = vpop.f32.mrb[0].mxu0
    %1793 = vdwg.mxu0
    %1794 = vmatprep.subr.bf16.mxu0 0
    %1795 = vmatpush1.bf16.msra.mxu0 %v1744
    %1796 = vmatprep.subr.bf16.mxu0 0
    %1797 = vmatpush1.bf16.msra.mxu0 0
    %1798 = vmatprep.subr.bf16.mxu0 0
    %1799 = vmatpush1.bf16.msra.mxu0 0
    %1800 = vmatprep.subr.bf16.mxu0 0
    %1801 = vmatpush1.bf16.msra.mxu0 0
    %1802 = vmatprep.subr.bf16.mxu0 0
    %1803 = vmatpush1.bf16.msra.mxu0 0
    %1804 = vmatprep.subr.bf16.mxu0 0
    %1805 = vmatpush1.bf16.msra.mxu0 0
    %1806 = vmatprep.subr.bf16.mxu0 0
    %1807 = vmatpush1.bf16.msra.mxu0 0
    %1808 = vmatprep.subr.bf16.mxu0 0
    %1809 = vmatpush1.bf16.msra.mxu0 0
    %1810 = vmatprep.subr.bf16.mxu0 0
    %1811 = vmatpush1.bf16.msra.mxu0 0
    %1812 = vmatprep.subr.bf16.mxu0 0
    %1813 = vmatpush1.bf16.msra.mxu0 0
    %1814 = vmatprep.subr.bf16.mxu0 0
    %1815 = vmatpush1.bf16.msra.mxu0 0
    %1816 = vmatprep.subr.bf16.mxu0 0
    %1817 = vmatpush1.bf16.msra.mxu0 0
    %1818 = vmatprep.subr.bf16.mxu0 0
    %1819 = vmatpush1.bf16.msra.mxu0 0
    %1820 = vmatprep.subr.bf16.mxu0 0
    %1821 = vmatpush1.bf16.msra.mxu0 0
    %1822 = vmatprep.subr.bf16.mxu0 0
    %1823 = vmatpush1.bf16.msra.mxu0 0
    %1824 = vmatprep.subr.bf16.mxu0 0
    %1825 = vmatpush1.bf16.msra.mxu0 0
    %1826 = vmatprep.mubr.bf16.mxu0 0
    %1827 = vmatmul.mubr.bf16.gmra.mrb[0].mxu0 %v722
    %v1828 = vpop.f32.mrb[0].mxu0
    %v1829 = vadd.f32 0.0, %v1828
    %v1830 = vpop.f32.mrb[0].mxu0
    %v1831 = vpop.f32.mrb[0].mxu0
    %v1832 = vadd.f32 0.0, %v1831
    %v1833 = vpop.f32.mrb[0].mxu0
    %1834 = vmatprep.mubr.bf16.mxu0 0
    %1835 = vmatmul.mubr.bf16.gmra.mrb[0].mxu0 %v725
    %v1836 = vpop.f32.mrb[0].mxu0
    %v1837 = vadd.f32 0.0, %v1836
    %v1838 = vpop.f32.mrb[0].mxu0
    %v1839 = vpop.f32.mrb[0].mxu0
    %v1840 = vpop.f32.mrb[0].mxu0
    %1841 = vdwg.mxu0
    %1845 = vrot.lane.b32.xlu0 %v1829, 16
    %v1846 = vpop.permute.xlu0 %1845
    %1847 = vrot.lane.b32.xlu0 %v1832, 16
    %v1848 = vpop.permute.xlu0 %1847
    %1849 = vrot.lane.b32.xlu0 %v1837, 16
    %v1850 = vpop.permute.xlu0 %1849
    %1857 = vrot.lane.b32.xlu0 %v365, 32
    %v1858 = vpop.permute.xlu0 %1857
    %1859 = vrot.lane.b32.xlu0 %v366, 32
    %v1860 = vpop.permute.xlu0 %1859
    %1861 = vrot.lane.b32.xlu0 %v367, 32
    %v1862 = vpop.permute.xlu0 %1861
    %1869 = vrot.lane.b32.xlu0 %v149, 48
    %v1870 = vpop.permute.xlu0 %1869
    %1871 = vrot.lane.b32.xlu0 %v150, 48
    %v1872 = vpop.permute.xlu0 %1871
    %1873 = vrot.lane.b32.xlu0 %v151, 48
    %v1874 = vpop.permute.xlu0 %1873
    %v1878 = vsel %vm304, %v1781, %v1846
    %v1879 = vsel %vm304, %v1784, %v1848
    %v1880 = vsel %vm304, %v1789, %v1850
    %v1881 = vsel %vm458, %v1878, %v1858
    %v1882 = vsel %vm458, %v1879, %v1860
    %v1883 = vsel %vm458, %v1880, %v1862
    %vm1884 = vcmask 392192
    %v1885 = vsel %vm1884, %v1881, %v1870
    %v1886 = vsel %vm1884, %v1882, %v1872
    %v1887 = vsel %vm1884, %v1883, %v1874
    %v1888 = vld [vmem:[%s53] sm:$0xff]
    %v1889 = vld [vmem:[%s53 + $0x8] sm:$0xff]
    %v1890 = vld [vmem:[%s53 + $0x10] sm:$0xff]
    %v1891 = vld [vmem:[%s53 + $0x18] sm:$0xff]
    %v1892 = vld [vmem:[%s53 + $0x20] sm:$0xff]
    %v1893 = vld [vmem:[%s53 + $0x28] sm:$0xff]
    %v1894 = vld [vmem:[%s53 + $0x30] sm:$0xff]
    %v1895 = vld [vmem:[%s53 + $0x38] sm:$0xf]
    %v1896 = vpack.c.bf16 %v1886, %v1885
    %v1897 = vpack.c.bf16 %v1887, %v1887
    %v1898 = vpack.c.bf16 %v1889, %v1888
    %v1899 = vpack.c.bf16 %v1891, %v1890
    %v1900 = vpack.c.bf16 %v1893, %v1892
    %v1901 = vpack.c.bf16 %v1895, %v1894
    %v1902 = vld [vmem:[%s55] sm:$0x1]
    %v1904 = vlaneseq
    %v1905 = vshrl.u32 %v1904, 7
    %v1906 = vsub.s32 0, %v1905
    %v1907 = vrot.slane %v1902, %v1906
    %vm1909 = vcmask 490496
    %v1911 = vsel %vm1909, %v1896, 0
    %v1914 = vsel %vm1909, %v1897, 0
    %v1917 = vsel %vm231, %v1901, 0
    %1919 = vmatprep.subr.bf16.mxu0 0
    %1920 = vmatpush1.bf16.msra.mxu0 %v1898
    %1921 = vmatprep.subr.bf16.mxu0 0
    %1922 = vmatpush1.bf16.msra.mxu0 %v1899
    %1923 = vmatprep.subr.bf16.mxu0 0
    %1924 = vmatpush1.bf16.msra.mxu0 %v1900
    %1925 = vmatprep.subr.bf16.mxu0 0
    %1926 = vmatpush1.bf16.msra.mxu0 %v1917
    %1927 = vmatprep.subr.bf16.mxu0 0
    %1928 = vmatpush1.bf16.msra.mxu0 0
    %1929 = vmatprep.subr.bf16.mxu0 0
    %1930 = vmatpush1.bf16.msra.mxu0 0
    %1931 = vmatprep.subr.bf16.mxu0 0
    %1932 = vmatpush1.bf16.msra.mxu0 0
    %1933 = vmatprep.subr.bf16.mxu0 0
    %1934 = vmatpush1.bf16.msra.mxu0 0
    %1935 = vmatprep.subr.bf16.mxu0 0
    %1936 = vmatpush1.bf16.msra.mxu0 0
    %1937 = vmatprep.subr.bf16.mxu0 0
    %1938 = vmatpush1.bf16.msra.mxu0 0
    %1939 = vmatprep.subr.bf16.mxu0 0
    %1940 = vmatpush1.bf16.msra.mxu0 0
    %1941 = vmatprep.subr.bf16.mxu0 0
    %1942 = vmatpush1.bf16.msra.mxu0 0
    %1943 = vmatprep.subr.bf16.mxu0 0
    %1944 = vmatpush1.bf16.msra.mxu0 0
    %1945 = vmatprep.subr.bf16.mxu0 0
    %1946 = vmatpush1.bf16.msra.mxu0 0
    %1947 = vmatprep.subr.bf16.mxu0 0
    %1948 = vmatpush1.bf16.msra.mxu0 0
    %1949 = vmatprep.subr.bf16.mxu0 0
    %1950 = vmatpush1.bf16.msra.mxu0 0
    %1951 = vmatprep.mubr.bf16.mxu0 0
    %1952 = vmatmul.mubr.bf16.gmra.mrb[0].mxu0 %v1911
    %v1953 = vpop.f32.mrb[0].mxu0
    %v1954 = vadd.f32 %v1907, %v1953
    %v1955 = vpop.f32.mrb[0].mxu0
    %v1956 = vpop.f32.mrb[0].mxu0
    %v1957 = vadd.f32 %v1907, %v1956
    %v1958 = vpop.f32.mrb[0].mxu0
    %1959 = vmatprep.mubr.bf16.mxu0 0
    %1960 = vmatmul.mubr.bf16.gmra.mrb[0].mxu0 %v1914
    %v1961 = vpop.f32.mrb[0].mxu0
    %v1962 = vadd.f32 %v1907, %v1961
    %v1963 = vpop.f32.mrb[0].mxu0
    %v1964 = vpop.f32.mrb[0].mxu0
    %v1965 = vpop.f32.mrb[0].mxu0
    %1966 = vdwg.mxu0
    %vm1967 = vcmp.ge.f32.partialorder %v1954, 0.0
    %vm1968 = vcmp.ge.f32.partialorder %v1957, 0.0
    %vm1969 = vcmp.ge.f32.partialorder %v1962, 0.0
    %v1970 = vmul.f32 %v1954, 0.01
    %v1971 = vmul.f32 %v1957, 0.01
    %v1972 = vmul.f32 %v1962, 0.01
    %v1973 = vsel %vm1967, %v1954, %v1970
    %v1974 = vsel %vm1968, %v1957, %v1971
    %v1975 = vsel %vm1969, %v1962, %v1972
    %v1976 = vld [vmem:[%s57] sm:$0x1]
    %v1977 = vpack.c.bf16 %v1976, %v1976
    %v1978 = vpack.c.bf16 %v1974, %v1973
    %v1979 = vpack.c.bf16 %v1975, %v1975
    %v1980 = vld [vmem:[#allocation2] sm:$0x1]
    %1982 = vset.pattern.permute.xlu0 0
    %1983 = vperm.xlu0 %1982, %v1980
    %v1984 = vpop.permute.xlu0 %1983
    %v1986 = vlaneseq
    %v1987 = vshrl.u32 %v1986, 7
    %v1988 = vsub.s32 0, %v1987
    %v1989 = vrot.slane %v1984, %v1988
    %v1991 = vsel %vm304, %v1977, 0
    %v1994 = vsel %vm304, %v1978, 0
    %v1997 = vsel %vm304, %v1979, 0
    %1999 = vmatprep.subr.bf16.mxu0 0
    %2000 = vmatpush1.bf16.xpose.msra.mxu0 %v1994
    %2001 = vmatprep.subr.bf16.mxu0 0
    %2002 = vmatpush1.bf16.xpose.msra.mxu0 %v1997
    %2003 = vmatprep.subr.bf16.mxu0 0
    %2004 = vmatpush1.bf16.xpose.msra.mxu0 0
    %2005 = vmatprep.subr.bf16.mxu0 0
    %2006 = vmatpush1.bf16.xpose.msra.mxu0 0
    %2007 = vmatprep.subr.bf16.mxu0 0
    %2008 = vmatpush1.bf16.xpose.msra.mxu0 0
    %2009 = vmatprep.subr.bf16.mxu0 0
    %2010 = vmatpush1.bf16.xpose.msra.mxu0 0
    %2011 = vmatprep.subr.bf16.mxu0 0
    %2012 = vmatpush1.bf16.xpose.msra.mxu0 0
    %2013 = vmatprep.subr.bf16.mxu0 0
    %2014 = vmatpush1.bf16.xpose.msra.mxu0 0
    %2015 = vmatprep.subr.bf16.mxu0 0
    %2016 = vmatpush1.bf16.xpose.msra.mxu0 0
    %2017 = vmatprep.subr.bf16.mxu0 0
    %2018 = vmatpush1.bf16.xpose.msra.mxu0 0
    %2019 = vmatprep.subr.bf16.mxu0 0
    %2020 = vmatpush1.bf16.xpose.msra.mxu0 0
    %2021 = vmatprep.subr.bf16.mxu0 0
    %2022 = vmatpush1.bf16.xpose.msra.mxu0 0
    %2023 = vmatprep.subr.bf16.mxu0 0
    %2024 = vmatpush1.bf16.xpose.msra.mxu0 0
    %2025 = vmatprep.subr.bf16.mxu0 0
    %2026 = vmatpush1.bf16.xpose.msra.mxu0 0
    %2027 = vmatprep.subr.bf16.mxu0 0
    %2028 = vmatpush1.bf16.xpose.msra.mxu0 0
    %2029 = vmatprep.subr.bf16.mxu0 0
    %2030 = vmatpush1.bf16.xpose.msra.mxu0 0
    %2031 = vmatprep.mubr.bf16.mxu0 0
    %2032 = vmatmul.mubr.bf16.gmra.mrb[0].mxu0 %v1991
    %v2033 = vpop.f32.mrb[0].mxu0
    %v2034 = vadd.f32 %v1989, %v2033
    %v2035 = vpop.f32.mrb[0].mxu0
    %v2036 = vpop.f32.mrb[0].mxu0
    %v2037 = vpop.f32.mrb[0].mxu0
    %2038 = vdwg.mxu0
    %v2039 = vxor.u32 %v2034, 2147483648
    %v2040 = vmul.f32 %v2039, 1.442695
    %v2041 = vpow.pop %v2040
    %v2042 = vadd.f32 %v2041, 1.0
    %v2043 = vrcp.pop %v2042
    %v2044 = vmul.f32 1.0, %v2043
    %vm2045 = vcmask 155648
    %2046 = vst.msk [vmem:[#allocation3] sm:$0x1] %vm2045, %v2044
    // Predicated region
    $region122: #{tpu_custom_call.1} parent=1 // pred_check
      _
    $region123: #{tpu_custom_call.1} parent=1 // pred_check_branch
      %2048 = sbr.rel (0) target = $region125
    $region124: #{tpu_custom_call.1} parent=1 // pred_region
      %s2050 = ssub.s32 16, 16
      %2051 = vsyncadd [#allocation4], %s2050
      %s2053 = sshll.u32 [#allocation3], 4
      %s2054 = int_to_ptr.vmem [resolvable:$true] %s2053
      %2056 = dma.vmem_to_hbm [thread:$0]  %s2054, 16, %s61, [#allocation4]
    $region125: #{tpu_custom_call.1} parent=1 // pred_fallthru
      _
    // Predicated region
    $region126: #{tpu_custom_call.1} parent=1 // pred_check
      _
    $region127: #{tpu_custom_call.1} parent=1 // pred_check_branch
      %2058 = sbr.rel (0) target = $region129
    $region128: #{tpu_custom_call.1} parent=1 // pred_region
      %2059 = dma.done [#allocation4], 16
    $region129: #{tpu_custom_call.1} parent=1 // pred_fallthru
      _
    %2060 = vsyncpa [#allocation4], 1

</llo_original>
